<compile_context>
chip_gen: v7x
topology: tpu7x:2x2x1
jax: 0.10.0
libtpu: 0.0.40
codegen_flags: <defaults>
</compile_context>

<pallas_src>
import functools

import jax
import jax.numpy as jnp
import numpy as np
from jax.experimental import pallas as pl
from jax.experimental.pallas import tpu as pltpu

_VMEM_LIMIT = 32 * 1024 * 1024  # within the default scoped VMEM of v5e/v6e/v7x


def _round_up(x: int, m: int) -> int:
    return (x + m - 1) // m * m


# ---------------------------------------------------------------------------
# Kernel 1: bilinear 2x upsample (align_corners=True) as out = A_h @ x @ A_w^T.
# One grid step handles ALL channels of one image (no per-(n,c) tiny steps).
# ---------------------------------------------------------------------------
def _bilinear_matrix(n_in: int, n_out: int) -> np.ndarray:
    """Interpolation matrix A (n_out, n_in) for align_corners=True bilinear."""
    A = np.zeros((n_out, n_in), dtype=np.float32)
    if n_in == 1:
        A[:, 0] = 1.0
        return A
    scale = (n_in - 1) / (n_out - 1)
    for i in range(n_out):
        src = i * scale
        i0 = min(int(np.floor(src)), n_in - 1)
        frac = src - i0
        i1 = min(i0 + 1, n_in - 1)
        A[i, i0] += 1.0 - frac
        A[i, i1] += frac
    return A


def _upsample_kernel(ah_ref, awt_ref, x_ref, o_ref):
    ah = ah_ref[...]                       # (Hu, H)
    awt = awt_ref[...]                     # (W, Wu)
    x = x_ref[...]                         # (C, H, W)
    for c in range(x_ref.shape[0]):        # static unroll over the channel block
        t = jnp.dot(ah, x[c], preferred_element_type=jnp.float32)
        o_ref[c] = jnp.dot(t, awt, preferred_element_type=jnp.float32)


def bilinear_up2x(x_nchw: jax.Array) -> jax.Array:
    N, C, H, W = x_nchw.shape
    Hu, Wu = 2 * H, 2 * W
    ah = jnp.asarray(_bilinear_matrix(H, Hu))        # (Hu, H)
    awt = jnp.asarray(_bilinear_matrix(W, Wu).T)     # (W, Wu)
    return pl.pallas_call(
        _upsample_kernel,
        out_shape=jax.ShapeDtypeStruct((N, C, Hu, Wu), jnp.float32),
        grid=(N,),
        in_specs=[
            pl.BlockSpec((Hu, H), lambda n: (0, 0)),
            pl.BlockSpec((W, Wu), lambda n: (0, 0)),
            pl.BlockSpec((None, C, H, W), lambda n: (n, 0, 0, 0)),
        ],
        out_specs=pl.BlockSpec((None, C, Hu, Wu), lambda n: (n, 0, 0, 0)),
        compiler_params=pltpu.CompilerParams(
            dimension_semantics=("parallel",), vmem_limit_bytes=_VMEM_LIMIT),
    )(ah, awt, x_nchw)


# ---------------------------------------------------------------------------
# Kernel 2/3: 3x3 valid conv as a single K=9*Cin bf16 matmul per image, with
# per-image masked BatchNorm partial stats.  The "dual" variant takes the two
# concatenated branches (x2_cropped, x1_up) as separate refs (fused concat);
# the "single" variant fuses the previous layer's BN+ReLU into its input stage.
#
# TODO(synk): for large spatial sizes, band each image over output rows with
# manual halo DMA (pl.ANY + pltpu.make_async_copy) so per-step VMEM stays
# bounded (especially for v7x's 64 MiB VMEM).
# ---------------------------------------------------------------------------
def _conv3x3_dual_kernel(xa_ref, xb_ref, w_ref, m_ref,
                         o_ref, ssum_ref, ssq_ref, *, width):
    lout = o_ref.shape[-1]
    xa = xa_ref[...]                        # (Ca_p, Lin) f32
    xb = xb_ref[...]                        # (Cb_p, Lin) f32
    pieces = []
    for ky in range(3):                     # fold the 9 taps into K = 9*Cin
        for kx in range(3):
            off = ky * width + kx
            pieces.append(xa[:, off:off + lout])
            pieces.append(xb[:, off:off + lout])
    patches = jnp.concatenate(pieces, axis=0).astype(jnp.bfloat16)  # (9*Cin_p, lout)
    acc = jnp.dot(w_ref[...], patches,
                  preferred_element_type=jnp.float32)               # (Cout_p, lout)
    o_ref[...] = acc
    m = m_ref[...]                          # (1, lout) validity mask for BN stats
    ssum_ref[...] = jnp.sum(acc * m, axis=1, keepdims=True)
    ssq_ref[...] = jnp.sum(acc * acc * m, axis=1, keepdims=True)


def _conv3x3_single_kernel(x_ref, scale_ref, shift_ref, w_ref, m_ref,
                           o_ref, ssum_ref, ssq_ref, *, width):
    lout = o_ref.shape[-1]
    # fused BatchNorm + ReLU of the previous conv's raw output (float32)
    x = jnp.maximum(x_ref[...] * scale_ref[...] + shift_ref[...], 0.0)
    pieces = []
    for ky in range(3):
        for kx in range(3):
            off = ky * width + kx
            pieces.append(x[:, off:off + lout])
    patches = jnp.concatenate(pieces, axis=0).astype(jnp.bfloat16)
    acc = jnp.dot(w_ref[...], patches, preferred_element_type=jnp.float32)
    o_ref[...] = acc
    m = m_ref[...]
    ssum_ref[...] = jnp.sum(acc * m, axis=1, keepdims=True)
    ssq_ref[...] = jnp.sum(acc * acc * m, axis=1, keepdims=True)


def _bn_relu_kernel(x_ref, scale_ref, shift_ref, o_ref):
    o_ref[...] = jnp.maximum(x_ref[...] * scale_ref[...] + shift_ref[...], 0.0)


def _conv_outputs(N, cout_p, lout):
    return (jax.ShapeDtypeStruct((N, cout_p, lout), jnp.float32),
            jax.ShapeDtypeStruct((N, cout_p, 1), jnp.float32),
            jax.ShapeDtypeStruct((N, cout_p, 1), jnp.float32))


def _conv_out_specs(cout_p, lout):
    return (pl.BlockSpec((None, cout_p, lout), lambda n: (n, 0, 0)),
            pl.BlockSpec((None, cout_p, 1), lambda n: (n, 0, 0)),
            pl.BlockSpec((None, cout_p, 1), lambda n: (n, 0, 0)))


def conv3x3_dual(xa, xb, w_bf16, mask, *, width, lout):
    N, ca_p, lin = xa.shape
    cb_p = xb.shape[1]
    cout_p = w_bf16.shape[0]
    return pl.pallas_call(
        functools.partial(_conv3x3_dual_kernel, width=width),
        out_shape=_conv_outputs(N, cout_p, lout),
        grid=(N,),
        in_specs=[
            pl.BlockSpec((None, ca_p, lin), lambda n: (n, 0, 0)),
            pl.BlockSpec((None, cb_p, lin), lambda n: (n, 0, 0)),
            pl.BlockSpec(w_bf16.shape, lambda n: (0, 0)),
            pl.BlockSpec(mask.shape, lambda n: (0, 0)),
        ],
        out_specs=_conv_out_specs(cout_p, lout),
        compiler_params=pltpu.CompilerParams(
            dimension_semantics=("parallel",), vmem_limit_bytes=_VMEM_LIMIT),
    )(xa, xb, w_bf16, mask)


def conv3x3_single(x, scale, shift, w_bf16, mask, *, width, lout):
    N, cin_p, lin = x.shape
    cout_p = w_bf16.shape[0]
    return pl.pallas_call(
        functools.partial(_conv3x3_single_kernel, width=width),
        out_shape=_conv_outputs(N, cout_p, lout),
        grid=(N,),
        in_specs=[
            pl.BlockSpec((None, cin_p, lin), lambda n: (n, 0, 0)),
            pl.BlockSpec(scale.shape, lambda n: (0, 0)),
            pl.BlockSpec(shift.shape, lambda n: (0, 0)),
            pl.BlockSpec(w_bf16.shape, lambda n: (0, 0)),
            pl.BlockSpec(mask.shape, lambda n: (0, 0)),
        ],
        out_specs=_conv_out_specs(cout_p, lout),
        compiler_params=pltpu.CompilerParams(
            dimension_semantics=("parallel",), vmem_limit_bytes=_VMEM_LIMIT),
    )(x, scale, shift, w_bf16, mask)


def bn_relu(x, scale, shift):
    N, c, l = x.shape
    return pl.pallas_call(
        _bn_relu_kernel,
        out_shape=jax.ShapeDtypeStruct((N, c, l), jnp.float32),
        grid=(N,),
        in_specs=[
            pl.BlockSpec((None, c, l), lambda n: (n, 0, 0)),
            pl.BlockSpec(scale.shape, lambda n: (0, 0)),
            pl.BlockSpec(shift.shape, lambda n: (0, 0)),
        ],
        out_specs=pl.BlockSpec((None, c, l), lambda n: (n, 0, 0)),
        compiler_params=pltpu.CompilerParams(
            dimension_semantics=("parallel",), vmem_limit_bytes=_VMEM_LIMIT),
    )(x, scale, shift)


# ---------------------------------------------------------------------------
# BatchNorm helpers (tiny XLA glue on (C,) vectors).
# ---------------------------------------------------------------------------
def _valid_mask(lout, width, ho, wo):
    idx = np.arange(lout)
    m = ((idx < ho * width) & (idx % width < wo)).astype(np.float32)
    return jnp.asarray(m[None, :])                   # (1, lout)


def _bn_scale_shift(ssum, ssq, gamma_p, beta_p, count):
    s1 = jnp.sum(ssum, axis=0)[:, 0]                 # (C_p,)
    s2 = jnp.sum(ssq, axis=0)[:, 0]
    mean = s1 / count
    var = s2 / count - mean * mean                   # biased -> BN training mode
    inv = jax.lax.rsqrt(var + 1e-5)
    scale = gamma_p * inv
    shift = beta_p - mean * scale
    return scale[:, None], shift[:, None]            # (C_p, 1) each


def _pad_gamma_beta(gamma, beta, c_p):
    c = gamma.shape[0]
    return (jnp.pad(gamma, (0, c_p - c), constant_values=1.0),
            jnp.pad(beta, (0, c_p - c), constant_values=0.0))


# ---------------------------------------------------------------------------
# Up module: params + forward
# ---------------------------------------------------------------------------
def init_up_params(key, in_channels: int, out_channels: int):
    mid = in_channels // 2
    ca = in_channels // 2            # x2_cropped channels
    cb = in_channels // 2            # upsampled x1 channels
    ca_p, cb_p = _round_up(ca, 8), _round_up(cb, 8)
    mid_p, out_p = _round_up(mid, 8), _round_up(out_channels, 8)
    k1, k2, k3 = jax.random.split(key, 3)
    # Conv weights in layout (Cout_p, 9*Cin_p); column = (ky*3+kx)*Cin_p + ci,
    # with ci ordered [x2_cropped | x1_up] for conv1 (== torch.cat order).
    # Zero rows/columns implement the channel padding to sublane multiples.
    w1 = jnp.zeros((mid_p, 3, 3, ca_p + cb_p), jnp.float32)
    w1 = w1.at[:mid, :, :, :ca].set(
        0.1 * jax.random.normal(k1, (mid, 3, 3, ca), jnp.float32))
    w1 = w1.at[:mid, :, :, ca_p:ca_p + cb].set(
        0.1 * jax.random.normal(k2, (mid, 3, 3, cb), jnp.float32))
    w2 = jnp.zeros((out_p, 3, 3, mid_p), jnp.float32)
    w2 = w2.at[:out_channels, :, :, :mid].set(
        0.1 * jax.random.normal(k3, (out_channels, 3, 3, mid), jnp.float32))
    return {
        "w1": w1.reshape(mid_p, 9 * (ca_p + cb_p)),
        "w2": w2.reshape(out_p, 9 * mid_p),
        # BatchNorm affine params at real (unpadded) sizes.  Conv bias omitted:
        # it cancels exactly under training-mode BatchNorm.
        "g1": jnp.ones((mid,), jnp.float32),
        "beta1": jnp.zeros((mid,), jnp.float32),
        "g2": jnp.ones((out_channels,), jnp.float32),
        "beta2": jnp.zeros((out_channels,), jnp.float32),
    }


@jax.jit
def up_forward(x1, x2, params):
    """x1: (N, C1, H, W), x2: (N, C2, H2, W2), NCHW float32 -> NCHW float32."""
    N, C1, _, _ = x1.shape
    _, C2, H2, W2 = x2.shape

    # 1) bilinear 2x upsample of x1 (Pallas)
    x1u = bilinear_up2x(x1)                                  # (N, C1, Hu, Wu)
    Hu, Wu = x1u.shape[2], x1u.shape[3]

    # 2) center-crop x2 to (Hu, Wu); the channel concat with x1u is fused into
    #    the first conv kernel (two input refs) -- no torch.cat materialization.
    cy, cx = (H2 - Hu) // 2, (W2 - Wu) // 2
    x2c = x2[:, :, cy:cy + Hu, cx:cx + Wu]

    # Flattened "row stride = Wu" geometry shared by both convs.
    Ho1, Wo1 = Hu - 2, Wu - 2
    Ho2, Wo2 = Ho1 - 2, Wo1 - 2
    halo = 2 * Wu + 2                       # furthest in-kernel tap offset (2,2)
    L2 = _round_up(Ho2 * Wu, 128)           # conv2 output columns (lane-dense)
    L1 = _round_up(max(Ho1 * Wu, halo + L2), 128)
    L0 = _round_up(halo + L1, 128)

    ca_p = _round_up(C2, 8)
    cb_p = _round_up(C1, 8)
    mid_p = params["w1"].shape[0]
    out_p = params["w2"].shape[0]
    cout = params["g2"].shape[0]

    # Flatten + zero-pad: channels to sublane multiples, lanes to L0.
    xa = jnp.pad(x2c.reshape(N, C2, Hu * Wu),
                 ((0, 0), (0, ca_p - C2), (0, L0 - Hu * Wu)))
    xb = jnp.pad(x1u.reshape(N, C1, Hu * Wu),
                 ((0, 0), (0, cb_p - C1), (0, L0 - Hu * Wu)))

    mask1 = _valid_mask(L1, Wu, Ho1, Wo1)
    mask2 = _valid_mask(L2, Wu, Ho2, Wo2)
    w1 = params["w1"].astype(jnp.bfloat16)
    w2 = params["w2"].astype(jnp.bfloat16)

    # 3a) conv1: one K=9*Cin bf16 matmul per image + per-image BN partial stats
    y1, s1, q1 = conv3x3_dual(xa, xb, w1, mask1, width=Wu, lout=L1)
    g1, b1 = _pad_gamma_beta(params["g1"], params["beta1"], mid_p)
    scale1, shift1 = _bn_scale_shift(s1, q1, g1, b1, N * Ho1 * Wo1)

    # 3b) conv2 with BN(conv1)+ReLU fused into its input stage
    y2, s2, q2 = conv3x3_single(y1, scale1, shift1, w2, mask2, width=Wu, lout=L2)
    g2, b2 = _pad_gamma_beta(params["g2"], params["beta2"], out_p)
    scale2, shift2 = _bn_scale_shift(s2, q2, g2, b2, N * Ho2 * Wo2)

    # 3c) final BN + ReLU (elementwise Pallas pass)
    y2n = bn_relu(y2, scale2, shift2)

    # Drop padded channels / garbage columns and un-flatten back to NCHW.
    out = y2n[:, :cout, :Ho2 * Wu].reshape(N, cout, Ho2, Wu)[:, :, :, :Wo2]
    return out


if __name__ == "__main__":
    # Classic UNet Up split: x1 carries in_channels//2 channels, x2 the skip.
    in_channels, out_channels = 8, 8
    N = 2
    key = jax.random.PRNGKey(0)
    kx1, kx2, kp = jax.random.split(key, 3)

    x1 = jax.random.normal(kx1, (N, in_channels // 2, 8, 8), jnp.float32)
    x2 = jax.random.normal(kx2, (N, in_channels // 2, 16, 16), jnp.float32)
    params = init_up_params(kp, in_channels, out_channels)

    out = jax.block_until_ready(up_forward(x1, x2, params))

    # upsample: 8->16, crop/concat: (2, 8, 16, 16), two valid 3x3 convs: 16->14->12
    assert out.shape == (N, out_channels, 12, 12), out.shape
    assert bool(jnp.all(jnp.isfinite(out)))
    print("KERNEL_OK")
</pallas_src>

<mosaic_0001>
module attributes {stable_mosaic.version = 11 : i64} {
  func.func @_conv3x3_dual_kernel(%arg0: i32, %arg1: memref<1x8x512xf32, #tpu.memory_space<vmem>>, %arg2: memref<1x8x512xf32, #tpu.memory_space<vmem>>, %arg3: memref<8x144xbf16, #tpu.memory_space<vmem>>, %arg4: memref<1x384xf32, #tpu.memory_space<vmem>>, %arg5: memref<1x8x384xf32, #tpu.memory_space<vmem>>, %arg6: memref<1x8x1xf32, #tpu.memory_space<vmem>>, %arg7: memref<1x8x1xf32, #tpu.memory_space<vmem>>) attributes {dimension_semantics = [#tpu.dimension_semantics<parallel>], iteration_bounds = array<i64: 2>, scalar_prefetch = 0 : i64, scratch_operands = 0 : i64, tpu.core_type = #tpu.core_type<tc>, window_params = [{transform_indices = @transform_0, window_bounds = array<i64: 1, 8, 512>}, {transform_indices = @transform_1, window_bounds = array<i64: 1, 8, 512>}, {pipeline_mode = #tpu.pipeline_mode<synchronous>, transform_indices = @transform_2, window_bounds = array<i64: 8, 144>}, {pipeline_mode = #tpu.pipeline_mode<synchronous>, transform_indices = @transform_3, window_bounds = array<i64: 1, 384>}, {transform_indices = @transform_4, window_bounds = array<i64: 1, 8, 384>}, {transform_indices = @transform_5, window_bounds = array<i64: 1, 8, 1>}, {transform_indices = @transform_6, window_bounds = array<i64: 1, 8, 1>}]} {
    %c0 = arith.constant 0 : index
    %c0_0 = arith.constant 0 : index
    %c0_1 = arith.constant 0 : index
    %0 = vector.load %arg1[%c0, %c0_0, %c0_1] : memref<1x8x512xf32, #tpu.memory_space<vmem>>, vector<1x8x512xf32>
    %1 = vector.shape_cast %0 : vector<1x8x512xf32> to vector<8x512xf32>
    %c0_2 = arith.constant 0 : index
    %c0_3 = arith.constant 0 : index
    %c0_4 = arith.constant 0 : index
    %2 = vector.load %arg2[%c0_2, %c0_3, %c0_4] : memref<1x8x512xf32, #tpu.memory_space<vmem>>, vector<1x8x512xf32>
    %3 = vector.shape_cast %2 : vector<1x8x512xf32> to vector<8x512xf32>
    %4 = vector.extract_strided_slice %1 {offsets = [0, 0], sizes = [8, 384], strides = [1, 1]} : vector<8x512xf32> to vector<8x384xf32>
    %5 = vector.extract_strided_slice %3 {offsets = [0, 0], sizes = [8, 384], strides = [1, 1]} : vector<8x512xf32> to vector<8x384xf32>
    %6 = vector.extract_strided_slice %1 {offsets = [0, 1], sizes = [8, 384], strides = [1, 1]} : vector<8x512xf32> to vector<8x384xf32>
    %7 = vector.extract_strided_slice %3 {offsets = [0, 1], sizes = [8, 384], strides = [1, 1]} : vector<8x512xf32> to vector<8x384xf32>
    %8 = vector.extract_strided_slice %1 {offsets = [0, 2], sizes = [8, 384], strides = [1, 1]} : vector<8x512xf32> to vector<8x384xf32>
    %9 = vector.extract_strided_slice %3 {offsets = [0, 2], sizes = [8, 384], strides = [1, 1]} : vector<8x512xf32> to vector<8x384xf32>
    %10 = vector.extract_strided_slice %1 {offsets = [0, 16], sizes = [8, 384], strides = [1, 1]} : vector<8x512xf32> to vector<8x384xf32>
    %11 = vector.extract_strided_slice %3 {offsets = [0, 16], sizes = [8, 384], strides = [1, 1]} : vector<8x512xf32> to vector<8x384xf32>
    %12 = vector.extract_strided_slice %1 {offsets = [0, 17], sizes = [8, 384], strides = [1, 1]} : vector<8x512xf32> to vector<8x384xf32>
    %13 = vector.extract_strided_slice %3 {offsets = [0, 17], sizes = [8, 384], strides = [1, 1]} : vector<8x512xf32> to vector<8x384xf32>
    %14 = vector.extract_strided_slice %1 {offsets = [0, 18], sizes = [8, 384], strides = [1, 1]} : vector<8x512xf32> to vector<8x384xf32>
    %15 = vector.extract_strided_slice %3 {offsets = [0, 18], sizes = [8, 384], strides = [1, 1]} : vector<8x512xf32> to vector<8x384xf32>
    %16 = vector.extract_strided_slice %1 {offsets = [0, 32], sizes = [8, 384], strides = [1, 1]} : vector<8x512xf32> to vector<8x384xf32>
    %17 = vector.extract_strided_slice %3 {offsets = [0, 32], sizes = [8, 384], strides = [1, 1]} : vector<8x512xf32> to vector<8x384xf32>
    %18 = vector.extract_strided_slice %1 {offsets = [0, 33], sizes = [8, 384], strides = [1, 1]} : vector<8x512xf32> to vector<8x384xf32>
    %19 = vector.extract_strided_slice %3 {offsets = [0, 33], sizes = [8, 384], strides = [1, 1]} : vector<8x512xf32> to vector<8x384xf32>
    %20 = vector.extract_strided_slice %1 {offsets = [0, 34], sizes = [8, 384], strides = [1, 1]} : vector<8x512xf32> to vector<8x384xf32>
    %21 = vector.extract_strided_slice %3 {offsets = [0, 34], sizes = [8, 384], strides = [1, 1]} : vector<8x512xf32> to vector<8x384xf32>
    %22 = tpu.concatenate %4, %5, %6, %7, %8, %9, %10, %11, %12, %13, %14, %15, %16, %17, %18, %19 in 0 : vector<8x384xf32>, vector<8x384xf32>, vector<8x384xf32>, vector<8x384xf32>, vector<8x384xf32>, vector<8x384xf32>, vector<8x384xf32>, vector<8x384xf32>, vector<8x384xf32>, vector<8x384xf32>, vector<8x384xf32>, vector<8x384xf32>, vector<8x384xf32>, vector<8x384xf32>, vector<8x384xf32>, vector<8x384xf32> -> vector<128x384xf32>
    %23 = tpu.concatenate %20, %21 in 0 : vector<8x384xf32>, vector<8x384xf32> -> vector<16x384xf32>
    %24 = tpu.concatenate %22, %23 in 0 : vector<128x384xf32>, vector<16x384xf32> -> vector<144x384xf32>
    %25 = arith.truncf %24 : vector<144x384xf32> to vector<144x384xbf16>
    %c0_5 = arith.constant 0 : index
    %c0_6 = arith.constant 0 : index
    %26 = vector.load %arg3[%c0_5, %c0_6] : memref<8x144xbf16, #tpu.memory_space<vmem>>, vector<8x144xbf16>
    %cst = arith.constant dense<0.000000e+00> : vector<8x384xf32>
    %27 = tpu.matmul %26, %25, %cst {dimension_numbers = #tpu.dot_dimension_numbers<[1], [0], [0], [1], [0, 0, 1, 1], [], []>} : vector<8x144xbf16>, vector<144x384xbf16>, vector<8x384xf32> -> vector<8x384xf32>
    %c0_7 = arith.constant 0 : index
    %c0_8 = arith.constant 0 : index
    %c0_9 = arith.constant 0 : index
    %28 = vector.load %arg5[%c0_7, %c0_8, %c0_9] : memref<1x8x384xf32, #tpu.memory_space<vmem>>, vector<1x8x384xf32>
    %29 = vector.shape_cast %28 : vector<1x8x384xf32> to vector<8x384xf32>
    %30 = vector.shape_cast %27 : vector<8x384xf32> to vector<1x8x384xf32>
    tpu.vector_store %arg5[%c0_7, %c0_8, %c0_9], %30 {strides = array<i32>} : memref<1x8x384xf32, #tpu.memory_space<vmem>>, vector<1x8x384xf32>,
    %c0_10 = arith.constant 0 : index
    %c0_11 = arith.constant 0 : index
    %31 = vector.load %arg4[%c0_10, %c0_11] : memref<1x384xf32, #tpu.memory_space<vmem>>, vector<1x384xf32>
    %32 = vector.broadcast %31 : vector<1x384xf32> to vector<8x384xf32>
    %33 = arith.mulf %27, %32 : vector<8x384xf32>
    %cst_12 = arith.constant dense<0.000000e+00> : vector<8xf32>
    %34 = vector.multi_reduction <add>, %33, %cst_12 [1] : vector<8x384xf32> to vector<8xf32>
    %35 = vector.shape_cast %34 : vector<8xf32> to vector<8x1xf32>
    %c0_13 = arith.constant 0 : index
    %c0_14 = arith.constant 0 : index
    %c0_15 = arith.constant 0 : index
    %36 = vector.load %arg6[%c0_13, %c0_14, %c0_15] : memref<1x8x1xf32, #tpu.memory_space<vmem>>, vector<1x8x1xf32>
    %37 = vector.shape_cast %36 : vector<1x8x1xf32> to vector<8x1xf32>
    %38 = vector.shape_cast %35 : vector<8x1xf32> to vector<1x8x1xf32>
    tpu.vector_store %arg6[%c0_13, %c0_14, %c0_15], %38 {strides = array<i32>} : memref<1x8x1xf32, #tpu.memory_space<vmem>>, vector<1x8x1xf32>,
    %39 = arith.mulf %27, %27 : vector<8x384xf32>
    %40 = vector.broadcast %31 : vector<1x384xf32> to vector<8x384xf32>
    %41 = arith.mulf %39, %40 : vector<8x384xf32>
    %cst_16 = arith.constant dense<0.000000e+00> : vector<8xf32>
    %42 = vector.multi_reduction <add>, %41, %cst_16 [1] : vector<8x384xf32> to vector<8xf32>
    %43 = vector.shape_cast %42 : vector<8xf32> to vector<8x1xf32>
    %c0_17 = arith.constant 0 : index
    %c0_18 = arith.constant 0 : index
    %c0_19 = arith.constant 0 : index
    %44 = vector.load %arg7[%c0_17, %c0_18, %c0_19] : memref<1x8x1xf32, #tpu.memory_space<vmem>>, vector<1x8x1xf32>
    %45 = vector.shape_cast %44 : vector<1x8x1xf32> to vector<8x1xf32>
    %46 = vector.shape_cast %43 : vector<8x1xf32> to vector<1x8x1xf32>
    tpu.vector_store %arg7[%c0_17, %c0_18, %c0_19], %46 {strides = array<i32>} : memref<1x8x1xf32, #tpu.memory_space<vmem>>, vector<1x8x1xf32>,
    return
  }
  func.func @transform_0(%arg0: i32) -> (i32, i32, i32) {
    %c0_i32 = arith.constant 0 : i32
    %c0_i32_0 = arith.constant 0 : i32
    %c0_i32_1 = arith.constant 0 : i32
    return %arg0, %c0_i32, %c0_i32_0 : i32, i32, i32
  }
  func.func @transform_1(%arg0: i32) -> (i32, i32, i32) {
    %c0_i32 = arith.constant 0 : i32
    %c0_i32_0 = arith.constant 0 : i32
    %c0_i32_1 = arith.constant 0 : i32
    return %arg0, %c0_i32, %c0_i32_0 : i32, i32, i32
  }
  func.func @transform_2(%arg0: i32) -> (i32, i32) {
    %c0_i32 = arith.constant 0 : i32
    %c0_i32_0 = arith.constant 0 : i32
    %c0_i32_1 = arith.constant 0 : i32
    return %c0_i32, %c0_i32_0 : i32, i32
  }
  func.func @transform_3(%arg0: i32) -> (i32, i32) {
    %c0_i32 = arith.constant 0 : i32
    %c0_i32_0 = arith.constant 0 : i32
    %c0_i32_1 = arith.constant 0 : i32
    return %c0_i32, %c0_i32_0 : i32, i32
  }
  func.func @transform_4(%arg0: i32) -> (i32, i32, i32) {
    %c0_i32 = arith.constant 0 : i32
    %c0_i32_0 = arith.constant 0 : i32
    %c0_i32_1 = arith.constant 0 : i32
    return %arg0, %c0_i32, %c0_i32_0 : i32, i32, i32
  }
  func.func @transform_5(%arg0: i32) -> (i32, i32, i32) {
    %c0_i32 = arith.constant 0 : i32
    %c0_i32_0 = arith.constant 0 : i32
    %c0_i32_1 = arith.constant 0 : i32
    return %arg0, %c0_i32, %c0_i32_0 : i32, i32, i32
  }
  func.func @transform_6(%arg0: i32) -> (i32, i32, i32) {
    %c0_i32 = arith.constant 0 : i32
    %c0_i32_0 = arith.constant 0 : i32
    %c0_i32_1 = arith.constant 0 : i32
    return %arg0, %c0_i32, %c0_i32_0 : i32, i32, i32
  }
}

module attributes {stable_mosaic.version = 11 : i64} {
  func.func @_upsample_kernel(%arg0: i32, %arg1: memref<16x8xf32, #tpu.memory_space<vmem>>, %arg2: memref<8x16xf32, #tpu.memory_space<vmem>>, %arg3: memref<1x4x8x8xf32, #tpu.memory_space<vmem>>, %arg4: memref<1x4x16x16xf32, #tpu.memory_space<vmem>>) attributes {dimension_semantics = [#tpu.dimension_semantics<parallel>], iteration_bounds = array<i64: 2>, scalar_prefetch = 0 : i64, scratch_operands = 0 : i64, tpu.core_type = #tpu.core_type<tc>, window_params = [{pipeline_mode = #tpu.pipeline_mode<synchronous>, transform_indices = @transform_0, window_bounds = array<i64: 16, 8>}, {pipeline_mode = #tpu.pipeline_mode<synchronous>, transform_indices = @transform_1, window_bounds = array<i64: 8, 16>}, {transform_indices = @transform_2, window_bounds = array<i64: 1, 4, 8, 8>}, {transform_indices = @transform_3, window_bounds = array<i64: 1, 4, 16, 16>}]} {
    %c0 = arith.constant 0 : index
    %c0_0 = arith.constant 0 : index
    %0 = vector.load %arg1[%c0, %c0_0] : memref<16x8xf32, #tpu.memory_space<vmem>>, vector<16x8xf32>
    %c0_1 = arith.constant 0 : index
    %c0_2 = arith.constant 0 : index
    %1 = vector.load %arg2[%c0_1, %c0_2] : memref<8x16xf32, #tpu.memory_space<vmem>>, vector<8x16xf32>
    %c0_3 = arith.constant 0 : index
    %c0_4 = arith.constant 0 : index
    %c0_5 = arith.constant 0 : index
    %c0_6 = arith.constant 0 : index
    %2 = vector.load %arg3[%c0_3, %c0_4, %c0_5, %c0_6] : memref<1x4x8x8xf32, #tpu.memory_space<vmem>>, vector<1x4x8x8xf32>
    %3 = vector.shape_cast %2 : vector<1x4x8x8xf32> to vector<4x8x8xf32>
    %4 = vector.extract_strided_slice %3 {offsets = [0, 0, 0], sizes = [1, 8, 8], strides = [1, 1, 1]} : vector<4x8x8xf32> to vector<1x8x8xf32>
    %5 = vector.shape_cast %4 : vector<1x8x8xf32> to vector<8x8xf32>
    %cst = arith.constant dense<0.000000e+00> : vector<16x8xf32>
    %6 = tpu.matmul %0, %5, %cst {dimension_numbers = #tpu.dot_dimension_numbers<[1], [0], [0], [1], [0, 0, 1, 1], [], []>} : vector<16x8xf32>, vector<8x8xf32>, vector<16x8xf32> -> vector<16x8xf32>
    %cst_7 = arith.constant dense<0.000000e+00> : vector<16x16xf32>
    %7 = tpu.matmul %6, %1, %cst_7 {dimension_numbers = #tpu.dot_dimension_numbers<[1], [0], [0], [1], [0, 0, 1, 1], [], []>} : vector<16x8xf32>, vector<8x16xf32>, vector<16x16xf32> -> vector<16x16xf32>
    %c0_8 = arith.constant 0 : index
    %c0_9 = arith.constant 0 : index
    %c0_10 = arith.constant 0 : index
    %c0_11 = arith.constant 0 : index
    %8 = vector.load %arg4[%c0_8, %c0_9, %c0_10, %c0_11] : memref<1x4x16x16xf32, #tpu.memory_space<vmem>>, vector<1x1x16x16xf32>
    %9 = vector.shape_cast %8 : vector<1x1x16x16xf32> to vector<16x16xf32>
    %10 = vector.shape_cast %7 : vector<16x16xf32> to vector<1x1x16x16xf32>
    tpu.vector_store %arg4[%c0_8, %c0_9, %c0_10, %c0_11], %10 {strides = array<i32>} : memref<1x4x16x16xf32, #tpu.memory_space<vmem>>, vector<1x1x16x16xf32>,
    %11 = vector.extract_strided_slice %3 {offsets = [1, 0, 0], sizes = [1, 8, 8], strides = [1, 1, 1]} : vector<4x8x8xf32> to vector<1x8x8xf32>
    %12 = vector.shape_cast %11 : vector<1x8x8xf32> to vector<8x8xf32>
    %cst_12 = arith.constant dense<0.000000e+00> : vector<16x8xf32>
    %13 = tpu.matmul %0, %12, %cst_12 {dimension_numbers = #tpu.dot_dimension_numbers<[1], [0], [0], [1], [0, 0, 1, 1], [], []>} : vector<16x8xf32>, vector<8x8xf32>, vector<16x8xf32> -> vector<16x8xf32>
    %cst_13 = arith.constant dense<0.000000e+00> : vector<16x16xf32>
    %14 = tpu.matmul %13, %1, %cst_13 {dimension_numbers = #tpu.dot_dimension_numbers<[1], [0], [0], [1], [0, 0, 1, 1], [], []>} : vector<16x8xf32>, vector<8x16xf32>, vector<16x16xf32> -> vector<16x16xf32>
    %c0_14 = arith.constant 0 : index
    %c1 = arith.constant 1 : index
    %c0_15 = arith.constant 0 : index
    %c0_16 = arith.constant 0 : index
    %15 = vector.load %arg4[%c0_14, %c1, %c0_15, %c0_16] : memref<1x4x16x16xf32, #tpu.memory_space<vmem>>, vector<1x1x16x16xf32>
    %16 = vector.shape_cast %15 : vector<1x1x16x16xf32> to vector<16x16xf32>
    %17 = vector.shape_cast %14 : vector<16x16xf32> to vector<1x1x16x16xf32>
    tpu.vector_store %arg4[%c0_14, %c1, %c0_15, %c0_16], %17 {strides = array<i32>} : memref<1x4x16x16xf32, #tpu.memory_space<vmem>>, vector<1x1x16x16xf32>,
    %18 = vector.extract_strided_slice %3 {offsets = [2, 0, 0], sizes = [1, 8, 8], strides = [1, 1, 1]} : vector<4x8x8xf32> to vector<1x8x8xf32>
    %19 = vector.shape_cast %18 : vector<1x8x8xf32> to vector<8x8xf32>
    %cst_17 = arith.constant dense<0.000000e+00> : vector<16x8xf32>
    %20 = tpu.matmul %0, %19, %cst_17 {dimension_numbers = #tpu.dot_dimension_numbers<[1], [0], [0], [1], [0, 0, 1, 1], [], []>} : vector<16x8xf32>, vector<8x8xf32>, vector<16x8xf32> -> vector<16x8xf32>
    %cst_18 = arith.constant dense<0.000000e+00> : vector<16x16xf32>
    %21 = tpu.matmul %20, %1, %cst_18 {dimension_numbers = #tpu.dot_dimension_numbers<[1], [0], [0], [1], [0, 0, 1, 1], [], []>} : vector<16x8xf32>, vector<8x16xf32>, vector<16x16xf32> -> vector<16x16xf32>
    %c0_19 = arith.constant 0 : index
    %c2 = arith.constant 2 : index
    %c0_20 = arith.constant 0 : index
    %c0_21 = arith.constant 0 : index
    %22 = vector.load %arg4[%c0_19, %c2, %c0_20, %c0_21] : memref<1x4x16x16xf32, #tpu.memory_space<vmem>>, vector<1x1x16x16xf32>
    %23 = vector.shape_cast %22 : vector<1x1x16x16xf32> to vector<16x16xf32>
    %24 = vector.shape_cast %21 : vector<16x16xf32> to vector<1x1x16x16xf32>
    tpu.vector_store %arg4[%c0_19, %c2, %c0_20, %c0_21], %24 {strides = array<i32>} : memref<1x4x16x16xf32, #tpu.memory_space<vmem>>, vector<1x1x16x16xf32>,
    %25 = vector.extract_strided_slice %3 {offsets = [3, 0, 0], sizes = [1, 8, 8], strides = [1, 1, 1]} : vector<4x8x8xf32> to vector<1x8x8xf32>
    %26 = vector.shape_cast %25 : vector<1x8x8xf32> to vector<8x8xf32>
    %cst_22 = arith.constant dense<0.000000e+00> : vector<16x8xf32>
    %27 = tpu.matmul %0, %26, %cst_22 {dimension_numbers = #tpu.dot_dimension_numbers<[1], [0], [0], [1], [0, 0, 1, 1], [], []>} : vector<16x8xf32>, vector<8x8xf32>, vector<16x8xf32> -> vector<16x8xf32>
    %cst_23 = arith.constant dense<0.000000e+00> : vector<16x16xf32>
    %28 = tpu.matmul %27, %1, %cst_23 {dimension_numbers = #tpu.dot_dimension_numbers<[1], [0], [0], [1], [0, 0, 1, 1], [], []>} : vector<16x8xf32>, vector<8x16xf32>, vector<16x16xf32> -> vector<16x16xf32>
    %c0_24 = arith.constant 0 : index
    %c3 = arith.constant 3 : index
    %c0_25 = arith.constant 0 : index
    %c0_26 = arith.constant 0 : index
    %29 = vector.load %arg4[%c0_24, %c3, %c0_25, %c0_26] : memref<1x4x16x16xf32, #tpu.memory_space<vmem>>, vector<1x1x16x16xf32>
    %30 = vector.shape_cast %29 : vector<1x1x16x16xf32> to vector<16x16xf32>
    %31 = vector.shape_cast %28 : vector<16x16xf32> to vector<1x1x16x16xf32>
    tpu.vector_store %arg4[%c0_24, %c3, %c0_25, %c0_26], %31 {strides = array<i32>} : memref<1x4x16x16xf32, #tpu.memory_space<vmem>>, vector<1x1x16x16xf32>,
    return
  }
  func.func @transform_0(%arg0: i32) -> (i32, i32) {
    %c0_i32 = arith.constant 0 : i32
    %c0_i32_0 = arith.constant 0 : i32
    %c0_i32_1 = arith.constant 0 : i32
    return %c0_i32, %c0_i32_0 : i32, i32
  }
  func.func @transform_1(%arg0: i32) -> (i32, i32) {
    %c0_i32 = arith.constant 0 : i32
    %c0_i32_0 = arith.constant 0 : i32
    %c0_i32_1 = arith.constant 0 : i32
    return %c0_i32, %c0_i32_0 : i32, i32
  }
  func.func @transform_2(%arg0: i32) -> (i32, i32, i32, i32) {
    %c0_i32 = arith.constant 0 : i32
    %c0_i32_0 = arith.constant 0 : i32
    %c0_i32_1 = arith.constant 0 : i32
    %c0_i32_2 = arith.constant 0 : i32
    return %arg0, %c0_i32, %c0_i32_0, %c0_i32_1 : i32, i32, i32, i32
  }
  func.func @transform_3(%arg0: i32) -> (i32, i32, i32, i32) {
    %c0_i32 = arith.constant 0 : i32
    %c0_i32_0 = arith.constant 0 : i32
    %c0_i32_1 = arith.constant 0 : i32
    %c0_i32_2 = arith.constant 0 : i32
    return %arg0, %c0_i32, %c0_i32_0, %c0_i32_1 : i32, i32, i32, i32
  }
}

module attributes {stable_mosaic.version = 11 : i64} {
  func.func @_conv3x3_single_kernel(%arg0: i32, %arg1: memref<1x8x384xf32, #tpu.memory_space<vmem>>, %arg2: memref<8x1xf32, #tpu.memory_space<vmem>>, %arg3: memref<8x1xf32, #tpu.memory_space<vmem>>, %arg4: memref<8x72xbf16, #tpu.memory_space<vmem>>, %arg5: memref<1x256xf32, #tpu.memory_space<vmem>>, %arg6: memref<1x8x256xf32, #tpu.memory_space<vmem>>, %arg7: memref<1x8x1xf32, #tpu.memory_space<vmem>>, %arg8: memref<1x8x1xf32, #tpu.memory_space<vmem>>) attributes {dimension_semantics = [#tpu.dimension_semantics<parallel>], iteration_bounds = array<i64: 2>, scalar_prefetch = 0 : i64, scratch_operands = 0 : i64, tpu.core_type = #tpu.core_type<tc>, window_params = [{transform_indices = @transform_0, window_bounds = array<i64: 1, 8, 384>}, {pipeline_mode = #tpu.pipeline_mode<synchronous>, transform_indices = @transform_1, window_bounds = array<i64: 8, 1>}, {pipeline_mode = #tpu.pipeline_mode<synchronous>, transform_indices = @transform_2, window_bounds = array<i64: 8, 1>}, {pipeline_mode = #tpu.pipeline_mode<synchronous>, transform_indices = @transform_3, window_bounds = array<i64: 8, 72>}, {pipeline_mode = #tpu.pipeline_mode<synchronous>, transform_indices = @transform_4, window_bounds = array<i64: 1, 256>}, {transform_indices = @transform_5, window_bounds = array<i64: 1, 8, 256>}, {transform_indices = @transform_6, window_bounds = array<i64: 1, 8, 1>}, {transform_indices = @transform_7, window_bounds = array<i64: 1, 8, 1>}]} {
    %c0 = arith.constant 0 : index
    %c0_0 = arith.constant 0 : index
    %c0_1 = arith.constant 0 : index
    %0 = vector.load %arg1[%c0, %c0_0, %c0_1] : memref<1x8x384xf32, #tpu.memory_space<vmem>>, vector<1x8x384xf32>
    %1 = vector.shape_cast %0 : vector<1x8x384xf32> to vector<8x384xf32>
    %c0_2 = arith.constant 0 : index
    %c0_3 = arith.constant 0 : index
    %2 = vector.load %arg2[%c0_2, %c0_3] : memref<8x1xf32, #tpu.memory_space<vmem>>, vector<8x1xf32>
    %3 = vector.broadcast %2 : vector<8x1xf32> to vector<8x384xf32>
    %4 = arith.mulf %1, %3 : vector<8x384xf32>
    %c0_4 = arith.constant 0 : index
    %c0_5 = arith.constant 0 : index
    %5 = vector.load %arg3[%c0_4, %c0_5] : memref<8x1xf32, #tpu.memory_space<vmem>>, vector<8x1xf32>
    %6 = vector.broadcast %5 : vector<8x1xf32> to vector<8x384xf32>
    %7 = arith.addf %4, %6 : vector<8x384xf32>
    %cst = arith.constant 0.000000e+00 : f32
    %8 = vector.broadcast %cst : f32 to vector<8x384xf32>
    %9 = arith.maximumf %7, %8 : vector<8x384xf32>
    %10 = vector.extract_strided_slice %9 {offsets = [0, 0], sizes = [8, 256], strides = [1, 1]} : vector<8x384xf32> to vector<8x256xf32>
    %11 = vector.extract_strided_slice %9 {offsets = [0, 1], sizes = [8, 256], strides = [1, 1]} : vector<8x384xf32> to vector<8x256xf32>
    %12 = vector.extract_strided_slice %9 {offsets = [0, 2], sizes = [8, 256], strides = [1, 1]} : vector<8x384xf32> to vector<8x256xf32>
    %13 = vector.extract_strided_slice %9 {offsets = [0, 16], sizes = [8, 256], strides = [1, 1]} : vector<8x384xf32> to vector<8x256xf32>
    %14 = vector.extract_strided_slice %9 {offsets = [0, 17], sizes = [8, 256], strides = [1, 1]} : vector<8x384xf32> to vector<8x256xf32>
    %15 = vector.extract_strided_slice %9 {offsets = [0, 18], sizes = [8, 256], strides = [1, 1]} : vector<8x384xf32> to vector<8x256xf32>
    %16 = vector.extract_strided_slice %9 {offsets = [0, 32], sizes = [8, 256], strides = [1, 1]} : vector<8x384xf32> to vector<8x256xf32>
    %17 = vector.extract_strided_slice %9 {offsets = [0, 33], sizes = [8, 256], strides = [1, 1]} : vector<8x384xf32> to vector<8x256xf32>
    %18 = vector.extract_strided_slice %9 {offsets = [0, 34], sizes = [8, 256], strides = [1, 1]} : vector<8x384xf32> to vector<8x256xf32>
    %19 = tpu.concatenate %10, %11, %12, %13, %14, %15, %16, %17, %18 in 0 : vector<8x256xf32>, vector<8x256xf32>, vector<8x256xf32>, vector<8x256xf32>, vector<8x256xf32>, vector<8x256xf32>, vector<8x256xf32>, vector<8x256xf32>, vector<8x256xf32> -> vector<72x256xf32>
    %20 = arith.truncf %19 : vector<72x256xf32> to vector<72x256xbf16>
    %c0_6 = arith.constant 0 : index
    %c0_7 = arith.constant 0 : index
    %21 = vector.load %arg4[%c0_6, %c0_7] : memref<8x72xbf16, #tpu.memory_space<vmem>>, vector<8x72xbf16>
    %cst_8 = arith.constant dense<0.000000e+00> : vector<8x256xf32>
    %22 = tpu.matmul %21, %20, %cst_8 {dimension_numbers = #tpu.dot_dimension_numbers<[1], [0], [0], [1], [0, 0, 1, 1], [], []>} : vector<8x72xbf16>, vector<72x256xbf16>, vector<8x256xf32> -> vector<8x256xf32>
    %c0_9 = arith.constant 0 : index
    %c0_10 = arith.constant 0 : index
    %c0_11 = arith.constant 0 : index
    %23 = vector.load %arg6[%c0_9, %c0_10, %c0_11] : memref<1x8x256xf32, #tpu.memory_space<vmem>>, vector<1x8x256xf32>
    %24 = vector.shape_cast %23 : vector<1x8x256xf32> to vector<8x256xf32>
    %25 = vector.shape_cast %22 : vector<8x256xf32> to vector<1x8x256xf32>
    tpu.vector_store %arg6[%c0_9, %c0_10, %c0_11], %25 {strides = array<i32>} : memref<1x8x256xf32, #tpu.memory_space<vmem>>, vector<1x8x256xf32>,
    %c0_12 = arith.constant 0 : index
    %c0_13 = arith.constant 0 : index
    %26 = vector.load %arg5[%c0_12, %c0_13] : memref<1x256xf32, #tpu.memory_space<vmem>>, vector<1x256xf32>
    %27 = vector.broadcast %26 : vector<1x256xf32> to vector<8x256xf32>
    %28 = arith.mulf %22, %27 : vector<8x256xf32>
    %cst_14 = arith.constant dense<0.000000e+00> : vector<8xf32>
    %29 = vector.multi_reduction <add>, %28, %cst_14 [1] : vector<8x256xf32> to vector<8xf32>
    %30 = vector.shape_cast %29 : vector<8xf32> to vector<8x1xf32>
    %c0_15 = arith.constant 0 : index
    %c0_16 = arith.constant 0 : index
    %c0_17 = arith.constant 0 : index
    %31 = vector.load %arg7[%c0_15, %c0_16, %c0_17] : memref<1x8x1xf32, #tpu.memory_space<vmem>>, vector<1x8x1xf32>
    %32 = vector.shape_cast %31 : vector<1x8x1xf32> to vector<8x1xf32>
    %33 = vector.shape_cast %30 : vector<8x1xf32> to vector<1x8x1xf32>
    tpu.vector_store %arg7[%c0_15, %c0_16, %c0_17], %33 {strides = array<i32>} : memref<1x8x1xf32, #tpu.memory_space<vmem>>, vector<1x8x1xf32>,
    %34 = arith.mulf %22, %22 : vector<8x256xf32>
    %35 = vector.broadcast %26 : vector<1x256xf32> to vector<8x256xf32>
    %36 = arith.mulf %34, %35 : vector<8x256xf32>
    %cst_18 = arith.constant dense<0.000000e+00> : vector<8xf32>
    %37 = vector.multi_reduction <add>, %36, %cst_18 [1] : vector<8x256xf32> to vector<8xf32>
    %38 = vector.shape_cast %37 : vector<8xf32> to vector<8x1xf32>
    %c0_19 = arith.constant 0 : index
    %c0_20 = arith.constant 0 : index
    %c0_21 = arith.constant 0 : index
    %39 = vector.load %arg8[%c0_19, %c0_20, %c0_21] : memref<1x8x1xf32, #tpu.memory_space<vmem>>, vector<1x8x1xf32>
    %40 = vector.shape_cast %39 : vector<1x8x1xf32> to vector<8x1xf32>
    %41 = vector.shape_cast %38 : vector<8x1xf32> to vector<1x8x1xf32>
    tpu.vector_store %arg8[%c0_19, %c0_20, %c0_21], %41 {strides = array<i32>} : memref<1x8x1xf32, #tpu.memory_space<vmem>>, vector<1x8x1xf32>,
    return
  }
  func.func @transform_0(%arg0: i32) -> (i32, i32, i32) {
    %c0_i32 = arith.constant 0 : i32
    %c0_i32_0 = arith.constant 0 : i32
    %c0_i32_1 = arith.constant 0 : i32
    return %arg0, %c0_i32, %c0_i32_0 : i32, i32, i32
  }
  func.func @transform_1(%arg0: i32) -> (i32, i32) {
    %c0_i32 = arith.constant 0 : i32
    %c0_i32_0 = arith.constant 0 : i32
    %c0_i32_1 = arith.constant 0 : i32
    return %c0_i32, %c0_i32_0 : i32, i32
  }
  func.func @transform_2(%arg0: i32) -> (i32, i32) {
    %c0_i32 = arith.constant 0 : i32
    %c0_i32_0 = arith.constant 0 : i32
    %c0_i32_1 = arith.constant 0 : i32
    return %c0_i32, %c0_i32_0 : i32, i32
  }
  func.func @transform_3(%arg0: i32) -> (i32, i32) {
    %c0_i32 = arith.constant 0 : i32
    %c0_i32_0 = arith.constant 0 : i32
    %c0_i32_1 = arith.constant 0 : i32
    return %c0_i32, %c0_i32_0 : i32, i32
  }
  func.func @transform_4(%arg0: i32) -> (i32, i32) {
    %c0_i32 = arith.constant 0 : i32
    %c0_i32_0 = arith.constant 0 : i32
    %c0_i32_1 = arith.constant 0 : i32
    return %c0_i32, %c0_i32_0 : i32, i32
  }
  func.func @transform_5(%arg0: i32) -> (i32, i32, i32) {
    %c0_i32 = arith.constant 0 : i32
    %c0_i32_0 = arith.constant 0 : i32
    %c0_i32_1 = arith.constant 0 : i32
    return %arg0, %c0_i32, %c0_i32_0 : i32, i32, i32
  }
  func.func @transform_6(%arg0: i32) -> (i32, i32, i32) {
    %c0_i32 = arith.constant 0 : i32
    %c0_i32_0 = arith.constant 0 : i32
    %c0_i32_1 = arith.constant 0 : i32
    return %arg0, %c0_i32, %c0_i32_0 : i32, i32, i32
  }
  func.func @transform_7(%arg0: i32) -> (i32, i32, i32) {
    %c0_i32 = arith.constant 0 : i32
    %c0_i32_0 = arith.constant 0 : i32
    %c0_i32_1 = arith.constant 0 : i32
    return %arg0, %c0_i32, %c0_i32_0 : i32, i32, i32
  }
}

module attributes {stable_mosaic.version = 11 : i64} {
  func.func @_bn_relu_kernel(%arg0: i32, %arg1: memref<1x8x256xf32, #tpu.memory_space<vmem>>, %arg2: memref<8x1xf32, #tpu.memory_space<vmem>>, %arg3: memref<8x1xf32, #tpu.memory_space<vmem>>, %arg4: memref<1x8x256xf32, #tpu.memory_space<vmem>>) attributes {dimension_semantics = [#tpu.dimension_semantics<parallel>], iteration_bounds = array<i64: 2>, scalar_prefetch = 0 : i64, scratch_operands = 0 : i64, tpu.core_type = #tpu.core_type<tc>, window_params = [{transform_indices = @transform_0, window_bounds = array<i64: 1, 8, 256>}, {pipeline_mode = #tpu.pipeline_mode<synchronous>, transform_indices = @transform_1, window_bounds = array<i64: 8, 1>}, {pipeline_mode = #tpu.pipeline_mode<synchronous>, transform_indices = @transform_2, window_bounds = array<i64: 8, 1>}, {transform_indices = @transform_3, window_bounds = array<i64: 1, 8, 256>}]} {
    %c0 = arith.constant 0 : index
    %c0_0 = arith.constant 0 : index
    %c0_1 = arith.constant 0 : index
    %0 = vector.load %arg1[%c0, %c0_0, %c0_1] : memref<1x8x256xf32, #tpu.memory_space<vmem>>, vector<1x8x256xf32>
    %1 = vector.shape_cast %0 : vector<1x8x256xf32> to vector<8x256xf32>
    %c0_2 = arith.constant 0 : index
    %c0_3 = arith.constant 0 : index
    %2 = vector.load %arg2[%c0_2, %c0_3] : memref<8x1xf32, #tpu.memory_space<vmem>>, vector<8x1xf32>
    %3 = vector.broadcast %2 : vector<8x1xf32> to vector<8x256xf32>
    %4 = arith.mulf %1, %3 : vector<8x256xf32>
    %c0_4 = arith.constant 0 : index
    %c0_5 = arith.constant 0 : index
    %5 = vector.load %arg3[%c0_4, %c0_5] : memref<8x1xf32, #tpu.memory_space<vmem>>, vector<8x1xf32>
    %6 = vector.broadcast %5 : vector<8x1xf32> to vector<8x256xf32>
    %7 = arith.addf %4, %6 : vector<8x256xf32>
    %cst = arith.constant 0.000000e+00 : f32
    %8 = vector.broadcast %cst : f32 to vector<8x256xf32>
    %9 = arith.maximumf %7, %8 : vector<8x256xf32>
    %c0_6 = arith.constant 0 : index
    %c0_7 = arith.constant 0 : index
    %c0_8 = arith.constant 0 : index
    %10 = vector.load %arg4[%c0_6, %c0_7, %c0_8] : memref<1x8x256xf32, #tpu.memory_space<vmem>>, vector<1x8x256xf32>
    %11 = vector.shape_cast %10 : vector<1x8x256xf32> to vector<8x256xf32>
    %12 = vector.shape_cast %9 : vector<8x256xf32> to vector<1x8x256xf32>
    tpu.vector_store %arg4[%c0_6, %c0_7, %c0_8], %12 {strides = array<i32>} : memref<1x8x256xf32, #tpu.memory_space<vmem>>, vector<1x8x256xf32>,
    return
  }
  func.func @transform_0(%arg0: i32) -> (i32, i32, i32) {
    %c0_i32 = arith.constant 0 : i32
    %c0_i32_0 = arith.constant 0 : i32
    %c0_i32_1 = arith.constant 0 : i32
    return %arg0, %c0_i32, %c0_i32_0 : i32, i32, i32
  }
  func.func @transform_1(%arg0: i32) -> (i32, i32) {
    %c0_i32 = arith.constant 0 : i32
    %c0_i32_0 = arith.constant 0 : i32
    %c0_i32_1 = arith.constant 0 : i32
    return %c0_i32, %c0_i32_0 : i32, i32
  }
  func.func @transform_2(%arg0: i32) -> (i32, i32) {
    %c0_i32 = arith.constant 0 : i32
    %c0_i32_0 = arith.constant 0 : i32
    %c0_i32_1 = arith.constant 0 : i32
    return %c0_i32, %c0_i32_0 : i32, i32
  }
  func.func @transform_3(%arg0: i32) -> (i32, i32, i32) {
    %c0_i32 = arith.constant 0 : i32
    %c0_i32_0 = arith.constant 0 : i32
    %c0_i32_1 = arith.constant 0 : i32
    return %arg0, %c0_i32, %c0_i32_0 : i32, i32, i32
  }
}

</mosaic_0001>

<llo_original>
// kernel: up_forward.7
$region0: #{up_forward.7}
  #allocation0 [shape = 'u32[]', space=smem, size = 0x4, offset = 0x4, fixed_abs, tag = 'smem constant byte address 0x4 - core index']
  #allocation1 [shape = 'u32[144,128]{1,0:T(1,128)}', space=vmem, size = 0x12000, scoped, tag = 'internal scratch']
  %s0 = inlined_call_operand.vmem [shape: f32[2,8,256], index: 0, kind: input, shape index: {}]
  %s1 = inlined_call_operand.vmem [shape: f32[8,1], index: 1, kind: input, shape index: {}]
  %s2 = inlined_call_operand.vmem [shape: f32[8,1], index: 2, kind: input, shape index: {}]
  %s3 = inlined_call_operand.vmem [shape: f32[2,8,256], index: 3, kind: output, shape index: {}]
  %s4 = sld [smem:[#allocation0]]
  $region45: #{up_forward.7} parent=0
    _
  %s6 = ssub.s32 1, %s4
  %s7 = scalar_select 0, %s6, %s4
  loop: start=0, step=1, limit=4
  $region2: #{up_forward.7} parent=0 // loop_pre_header
    _
  $region3: #{up_forward.7} parent=0 // loop_header
    %s9 = sphi 0, %s13
    %p10 = scmp.ge.s32.totalorder %s9, 4
    %s19 = sphi 0, %s21
    %s22 = sphi 0, %s19
    %s23 = sphi 0, %s22
    %s39 = sphi 0, %s23
    %s43 = sphi 0, %s43
    %s45 = sphi 0, %s43
    %s46 = sphi 0, %s45
    %s60 = sphi 0, %s46
    %s64 = sphi 0, %s64
    %s66 = sphi 0, %s64
    %s67 = sphi 0, %s66
    %s81 = sphi 0, %s67
    %s87 = sphi 0, %s89
    %s90 = sphi 0, %s87
    %s91 = sphi 0, %s90
    %s107 = sphi 0, %s91
  $region4: #{up_forward.7} parent=0 // loop_header_branch
    %12 = sbr.rel (%p10) target = $region8
  $region5: #{up_forward.7} parent=0 // loop_body
    %s14 = ssub.s32 %s9, 1
    %s15 = ssub.s32 %s9, 2
    %s16 = sadd.s32 %s9, 1
    %s17 = ssub.s32 %s9, %s16
    %p18 = scmp.eq.s32.totalorder %s17, 0
    %s20 = sadd.s32 %s19, 1
    %s21 = scalar_select %p18, %s19, %s20
    %p24 = pneg %p18
    %p25 = scmp.eq.s32.totalorder %s9, 1
    %p26 = por %p24, %p25
    %p27 = scmp.ne.s32.totalorder %s19, %s22
    %p28 = scmp.eq.s32.totalorder %s9, 0
    %p29 = por %p27, %p28
    %p30 = scmp.ne.s32.totalorder %s19, %s22
    %p31 = scmp.eq.s32.totalorder %s14, 1
    %p32 = por %p30, %p31
    %p33 = scmp.ne.s32.totalorder %s22, %s23
    %p34 = scmp.eq.s32.totalorder %s14, 0
    %p35 = por %p33, %p34
    %p36 = scmp.ne.s32.totalorder %s22, %s23
    %p37 = scmp.eq.s32.totalorder %s15, 1
    %p38 = por %p36, %p37
    %p40 = scmp.ne.s32.totalorder %s23, %s39
    %p41 = scmp.eq.s32.totalorder %s15, 0
    %p42 = por %p40, %p41
    %s44 = sadd.s32 %s43, 1
    %p47 = scmp.eq.s32.totalorder %s9, 1
    %p48 = scmp.ne.s32.totalorder %s43, %s45
    %p49 = scmp.eq.s32.totalorder %s9, 0
    %p50 = por %p48, %p49
    %p51 = scmp.ne.s32.totalorder %s43, %s45
    %p52 = scmp.eq.s32.totalorder %s14, 1
    %p53 = por %p51, %p52
    %p54 = scmp.ne.s32.totalorder %s45, %s46
    %p55 = scmp.eq.s32.totalorder %s14, 0
    %p56 = por %p54, %p55
    %p57 = scmp.ne.s32.totalorder %s45, %s46
    %p58 = scmp.eq.s32.totalorder %s15, 1
    %p59 = por %p57, %p58
    %p61 = scmp.ne.s32.totalorder %s46, %s60
    %p62 = scmp.eq.s32.totalorder %s15, 0
    %p63 = por %p61, %p62
    %s65 = sadd.s32 %s64, 1
    %p68 = scmp.eq.s32.totalorder %s9, 1
    %p69 = scmp.ne.s32.totalorder %s64, %s66
    %p70 = scmp.eq.s32.totalorder %s9, 0
    %p71 = por %p69, %p70
    %p72 = scmp.ne.s32.totalorder %s64, %s66
    %p73 = scmp.eq.s32.totalorder %s14, 1
    %p74 = por %p72, %p73
    %p75 = scmp.ne.s32.totalorder %s66, %s67
    %p76 = scmp.eq.s32.totalorder %s14, 0
    %p77 = por %p75, %p76
    %p78 = scmp.ne.s32.totalorder %s66, %s67
    %p79 = scmp.eq.s32.totalorder %s15, 1
    %p80 = por %p78, %p79
    %p82 = scmp.ne.s32.totalorder %s67, %s81
    %p83 = scmp.eq.s32.totalorder %s15, 0
    %p84 = por %p82, %p83
    %s85 = ssub.s32 %s9, %s16
    %p86 = scmp.eq.s32.totalorder %s85, 0
    %s88 = sadd.s32 %s87, 1
    %s89 = scalar_select %p86, %s87, %s88
    %p92 = pneg %p86
    %p93 = scmp.eq.s32.totalorder %s9, 1
    %p94 = por %p92, %p93
    %p95 = scmp.ne.s32.totalorder %s87, %s90
    %p96 = scmp.eq.s32.totalorder %s9, 0
    %p97 = por %p95, %p96
    %p98 = scmp.ne.s32.totalorder %s87, %s90
    %p99 = scmp.eq.s32.totalorder %s14, 1
    %p100 = por %p98, %p99
    %p101 = scmp.ne.s32.totalorder %s90, %s91
    %p102 = scmp.eq.s32.totalorder %s14, 0
    %p103 = por %p101, %p102
    %p104 = scmp.ne.s32.totalorder %s90, %s91
    %p105 = scmp.eq.s32.totalorder %s15, 1
    %p106 = por %p104, %p105
    %p108 = scmp.ne.s32.totalorder %s91, %s107
    %p109 = scmp.eq.s32.totalorder %s15, 0
    %p110 = por %p108, %p109
    %p111 = scmp.le.s32.totalorder 1, %s9
    %p112 = scmp.lt.s32.totalorder %s9, 3
    %p113 = pnand %p111, %p112
    %p114 = pneg %p113
    // Predicated region
    $region9: #{up_forward.7} parent=5 // pred_check
      _
    $region10: #{up_forward.7} parent=5 // pred_check_branch
      %116 = sbr.rel (%p113) target = $region12
    $region11: #{up_forward.7} parent=5 // pred_region
      %s117 = ssub.s32 %s9, 1
      // Predicated region
      $region13: #{up_forward.7} parent=11 // pred_check
        %p118 = pneg %p56
      $region14: #{up_forward.7} parent=11 // pred_check_branch
        %120 = sbr.rel (%p118) target = $region16
      $region15: #{up_forward.7} parent=11 // pred_region
        _
      $region16: #{up_forward.7} parent=11 // pred_fallthru
        _
      // Predicated region
      $region17: #{up_forward.7} parent=11 // pred_check
        %p121 = pneg %p77
      $region18: #{up_forward.7} parent=11 // pred_check_branch
        %123 = sbr.rel (%p121) target = $region20
      $region19: #{up_forward.7} parent=11 // pred_region
        _
      $region20: #{up_forward.7} parent=11 // pred_fallthru
        _
    $region12: #{up_forward.7} parent=5 // pred_fallthru
      _
    %p124 = scmp.lt.s32.totalorder %s9, 2
    // Predicated region
    $region21: #{up_forward.7} parent=5 // pred_check
      %p125 = pneg %p124
    $region22: #{up_forward.7} parent=5 // pred_check_branch
      %127 = sbr.rel (%p125) target = $region24
    $region23: #{up_forward.7} parent=5 // pred_region
      // Predicated region
      $region25: #{up_forward.7} parent=23 // pred_check
        %p128 = pneg %p29
      $region26: #{up_forward.7} parent=23 // pred_check_branch
        %130 = sbr.rel (%p128) target = $region28
      $region27: #{up_forward.7} parent=23 // pred_region
        %p131 = scmp.lt.s32.totalorder %s9, 1
        %s132 = scalar_select %p131, %s9, 1
        %s133 = smul.addr %s132, 2
        %s134 = smul.addr %s133, 8
        %s135 = scalar_lea.vmem %s0, %s134
      $region28: #{up_forward.7} parent=23 // pred_fallthru
        _
    $region24: #{up_forward.7} parent=5 // pred_fallthru
      _
    %p136 = scmp.le.s32.totalorder 1, %s9
    %p137 = scmp.lt.s32.totalorder %s9, 3
    %p138 = pnand %p136, %p137
    %p139 = pneg %p138
    // Predicated region
    $region29: #{up_forward.7} parent=5 // pred_check
      _
    $region30: #{up_forward.7} parent=5 // pred_check_branch
      %141 = sbr.rel (%p138) target = $region32
    $region31: #{up_forward.7} parent=5 // pred_region
      %s142 = ssub.s32 %s9, 1
      %p143 = scmp.lt.s32.totalorder %s14, 1
      %s144 = scalar_select %p143, %s14, 1
      %s145 = smul.addr %s144, 2
      %s146 = smul.addr %s145, 8
      %s147 = scalar_lea.vmem %s0, %s146
      %p148 = pneg %p35
      %p149 = pneg %p32
      %p150 = pneg %p56
      %p151 = pneg %p53
      %p152 = pneg %p77
      %p153 = pneg %p74
      %p154 = pneg %p103
      %p155 = pneg %p100
      %p156 = scmp.lt.s32.totalorder %s14, 1
      %s157 = scalar_select %p156, %s14, 1
      %s158 = smul.addr %s157, 2
      %s159 = smul.addr %s158, 8
      %s160 = scalar_lea.vmem %s3, %s159
      %p161 = scmp.lt.s32.totalorder %s14, 1
      %s162 = scalar_select %p161, %s14, 1
      %s163 = smul.addr %s162, 2
      %s164 = smul.addr %s163, 8
      %s165 = scalar_lea.vmem %s0, %s164
      %p166 = scmp.lt.s32.totalorder %s14, 1
      %s167 = scalar_select %p166, %s14, 1
      %s168 = smul.addr %s167, 2
      %s169 = smul.addr %s168, 8
      %s170 = scalar_lea.vmem %s3, %s169
      %v171 = vld [vmem:[%s165] sm:$0xff]
      %v172 = vld [vmem:[%s165 + $0x8] sm:$0xff]
      %v173 = vld [vmem:[%s1] sm:$0xff]
      %175 = vset.pattern.permute.xlu0 0
      %176 = vperm.xlu0 %175, %v173
      %v177 = vpop.permute.xlu0 %176
      %v179 = vmul.f32 %v171, %v177
      %v180 = vmul.f32 %v172, %v177
      %v181 = vld [vmem:[%s2] sm:$0xff]
      %183 = vset.pattern.permute.xlu0 0
      %184 = vperm.xlu0 %183, %v181
      %v185 = vpop.permute.xlu0 %184
      %v187 = vadd.f32 %v179, %v185
      %v188 = vadd.f32 %v180, %v185
      %v189 = vmax.f32 %v187, 0.0
      %v190 = vmax.f32 %v188, 0.0
      %191 = vst [vmem:[%s170] sm:$0xff] %v189
      %192 = vst [vmem:[%s170 + $0x8] sm:$0xff] %v190
      %p193 = scmp.lt.s32.totalorder %s14, 1
      %s194 = scalar_select %p193, %s14, 1
      %s195 = smul.addr %s194, 2
      %s196 = smul.addr %s195, 8
      %s197 = scalar_lea.vmem %s3, %s196
      // Predicated region
      $region33: #{up_forward.7} parent=31 // pred_check
        %p198 = pneg %p100
      $region34: #{up_forward.7} parent=31 // pred_check_branch
        %200 = sbr.rel (%p198) target = $region36
      $region35: #{up_forward.7} parent=31 // pred_region
        _
      $region36: #{up_forward.7} parent=31 // pred_fallthru
        _
    $region32: #{up_forward.7} parent=5 // pred_fallthru
      _
    %p201 = scmp.le.s32.totalorder 2, %s9
    // Predicated region
    $region37: #{up_forward.7} parent=5 // pred_check
      %p202 = pneg %p201
    $region38: #{up_forward.7} parent=5 // pred_check_branch
      %204 = sbr.rel (%p202) target = $region40
    $region39: #{up_forward.7} parent=5 // pred_region
      %s205 = ssub.s32 %s9, 2
      // Predicated region
      $region41: #{up_forward.7} parent=39 // pred_check
        %p206 = pneg %p106
      $region42: #{up_forward.7} parent=39 // pred_check_branch
        %208 = sbr.rel (%p206) target = $region44
      $region43: #{up_forward.7} parent=39 // pred_region
        %p209 = scmp.lt.s32.totalorder %s15, 1
        %s210 = scalar_select %p209, %s15, 1
        %s211 = smul.addr %s210, 2
        %s212 = smul.addr %s211, 8
        %s213 = scalar_lea.vmem %s3, %s212
      $region44: #{up_forward.7} parent=39 // pred_fallthru
        _
    $region40: #{up_forward.7} parent=5 // pred_fallthru
      _
  $region6: #{up_forward.7} parent=0 // loop_footer
    %s13 = sadd.s32 1, %s9
  $region7: #{up_forward.7} parent=0 // loop_footer_branch
    %8 = sbr.rel target = $region3
  $region8: #{up_forward.7} parent=0 // loop_exit
    _

// kernel: up_forward.5
$region0: #{up_forward.5}
  #allocation0 [shape = 'u32[]', space=smem, size = 0x4, offset = 0x4, fixed_abs, tag = 'smem constant byte address 0x4 - core index']
  #allocation1 [shape = 'u32[144,128]{1,0:T(1,128)}', space=vmem, size = 0x12000, scoped, tag = 'internal scratch']
  %s0 = inlined_call_operand.vmem [shape: f32[2,8,512], index: 0, kind: input, shape index: {}]
  %s1 = inlined_call_operand.vmem [shape: f32[2,8,512], index: 1, kind: input, shape index: {}]
  %s2 = inlined_call_operand.vmem [shape: bf16[8,144], index: 2, kind: input, shape index: {}]
  %s3 = inlined_call_operand.vmem [shape: f32[1,384], index: 3, kind: input, shape index: {}]
  %s4 = inlined_call_operand.vmem [shape: f32[2,8,384], index: 4, kind: output, shape index: {0}]
  %s5 = inlined_call_operand.vmem [shape: f32[2,8,1], index: 5, kind: output, shape index: {1}]
  %s6 = inlined_call_operand.vmem [shape: f32[2,8,1], index: 6, kind: output, shape index: {2}]
  %7 = xla_tuple %s4, %s5, %s6
  %s8 = sld [smem:[#allocation0]]
  $region65: #{up_forward.5} parent=0
    _
  %s10 = ssub.s32 1, %s8
  %s11 = scalar_select 0, %s10, %s8
  loop: start=0, step=1, limit=4
  $region2: #{up_forward.5} parent=0 // loop_pre_header
    _
  $region3: #{up_forward.5} parent=0 // loop_header
    %s13 = sphi 0, %s17
    %p14 = scmp.ge.s32.totalorder %s13, 4
    %s23 = sphi 0, %s25
    %s26 = sphi 0, %s23
    %s27 = sphi 0, %s26
    %s43 = sphi 0, %s27
    %s49 = sphi 0, %s51
    %s52 = sphi 0, %s49
    %s53 = sphi 0, %s52
    %s69 = sphi 0, %s53
    %s73 = sphi 0, %s73
    %s75 = sphi 0, %s73
    %s76 = sphi 0, %s75
    %s90 = sphi 0, %s76
    %s94 = sphi 0, %s94
    %s96 = sphi 0, %s94
    %s97 = sphi 0, %s96
    %s111 = sphi 0, %s97
    %s117 = sphi 0, %s119
    %s120 = sphi 0, %s117
    %s121 = sphi 0, %s120
    %s137 = sphi 0, %s121
    %s143 = sphi 0, %s145
    %s146 = sphi 0, %s143
    %s147 = sphi 0, %s146
    %s163 = sphi 0, %s147
    %s169 = sphi 0, %s171
    %s172 = sphi 0, %s169
    %s173 = sphi 0, %s172
    %s189 = sphi 0, %s173
  $region4: #{up_forward.5} parent=0 // loop_header_branch
    %16 = sbr.rel (%p14) target = $region8
  $region5: #{up_forward.5} parent=0 // loop_body
    %s18 = ssub.s32 %s13, 1
    %s19 = ssub.s32 %s13, 2
    %s20 = sadd.s32 %s13, 1
    %s21 = ssub.s32 %s13, %s20
    %p22 = scmp.eq.s32.totalorder %s21, 0
    %s24 = sadd.s32 %s23, 1
    %s25 = scalar_select %p22, %s23, %s24
    %p28 = pneg %p22
    %p29 = scmp.eq.s32.totalorder %s13, 1
    %p30 = por %p28, %p29
    %p31 = scmp.ne.s32.totalorder %s23, %s26
    %p32 = scmp.eq.s32.totalorder %s13, 0
    %p33 = por %p31, %p32
    %p34 = scmp.ne.s32.totalorder %s23, %s26
    %p35 = scmp.eq.s32.totalorder %s18, 1
    %p36 = por %p34, %p35
    %p37 = scmp.ne.s32.totalorder %s26, %s27
    %p38 = scmp.eq.s32.totalorder %s18, 0
    %p39 = por %p37, %p38
    %p40 = scmp.ne.s32.totalorder %s26, %s27
    %p41 = scmp.eq.s32.totalorder %s19, 1
    %p42 = por %p40, %p41
    %p44 = scmp.ne.s32.totalorder %s27, %s43
    %p45 = scmp.eq.s32.totalorder %s19, 0
    %p46 = por %p44, %p45
    %s47 = ssub.s32 %s13, %s20
    %p48 = scmp.eq.s32.totalorder %s47, 0
    %s50 = sadd.s32 %s49, 1
    %s51 = scalar_select %p48, %s49, %s50
    %p54 = pneg %p48
    %p55 = scmp.eq.s32.totalorder %s13, 1
    %p56 = por %p54, %p55
    %p57 = scmp.ne.s32.totalorder %s49, %s52
    %p58 = scmp.eq.s32.totalorder %s13, 0
    %p59 = por %p57, %p58
    %p60 = scmp.ne.s32.totalorder %s49, %s52
    %p61 = scmp.eq.s32.totalorder %s18, 1
    %p62 = por %p60, %p61
    %p63 = scmp.ne.s32.totalorder %s52, %s53
    %p64 = scmp.eq.s32.totalorder %s18, 0
    %p65 = por %p63, %p64
    %p66 = scmp.ne.s32.totalorder %s52, %s53
    %p67 = scmp.eq.s32.totalorder %s19, 1
    %p68 = por %p66, %p67
    %p70 = scmp.ne.s32.totalorder %s53, %s69
    %p71 = scmp.eq.s32.totalorder %s19, 0
    %p72 = por %p70, %p71
    %s74 = sadd.s32 %s73, 1
    %p77 = scmp.eq.s32.totalorder %s13, 1
    %p78 = scmp.ne.s32.totalorder %s73, %s75
    %p79 = scmp.eq.s32.totalorder %s13, 0
    %p80 = por %p78, %p79
    %p81 = scmp.ne.s32.totalorder %s73, %s75
    %p82 = scmp.eq.s32.totalorder %s18, 1
    %p83 = por %p81, %p82
    %p84 = scmp.ne.s32.totalorder %s75, %s76
    %p85 = scmp.eq.s32.totalorder %s18, 0
    %p86 = por %p84, %p85
    %p87 = scmp.ne.s32.totalorder %s75, %s76
    %p88 = scmp.eq.s32.totalorder %s19, 1
    %p89 = por %p87, %p88
    %p91 = scmp.ne.s32.totalorder %s76, %s90
    %p92 = scmp.eq.s32.totalorder %s19, 0
    %p93 = por %p91, %p92
    %s95 = sadd.s32 %s94, 1
    %p98 = scmp.eq.s32.totalorder %s13, 1
    %p99 = scmp.ne.s32.totalorder %s94, %s96
    %p100 = scmp.eq.s32.totalorder %s13, 0
    %p101 = por %p99, %p100
    %p102 = scmp.ne.s32.totalorder %s94, %s96
    %p103 = scmp.eq.s32.totalorder %s18, 1
    %p104 = por %p102, %p103
    %p105 = scmp.ne.s32.totalorder %s96, %s97
    %p106 = scmp.eq.s32.totalorder %s18, 0
    %p107 = por %p105, %p106
    %p108 = scmp.ne.s32.totalorder %s96, %s97
    %p109 = scmp.eq.s32.totalorder %s19, 1
    %p110 = por %p108, %p109
    %p112 = scmp.ne.s32.totalorder %s97, %s111
    %p113 = scmp.eq.s32.totalorder %s19, 0
    %p114 = por %p112, %p113
    %s115 = ssub.s32 %s13, %s20
    %p116 = scmp.eq.s32.totalorder %s115, 0
    %s118 = sadd.s32 %s117, 1
    %s119 = scalar_select %p116, %s117, %s118
    %p122 = pneg %p116
    %p123 = scmp.eq.s32.totalorder %s13, 1
    %p124 = por %p122, %p123
    %p125 = scmp.ne.s32.totalorder %s117, %s120
    %p126 = scmp.eq.s32.totalorder %s13, 0
    %p127 = por %p125, %p126
    %p128 = scmp.ne.s32.totalorder %s117, %s120
    %p129 = scmp.eq.s32.totalorder %s18, 1
    %p130 = por %p128, %p129
    %p131 = scmp.ne.s32.totalorder %s120, %s121
    %p132 = scmp.eq.s32.totalorder %s18, 0
    %p133 = por %p131, %p132
    %p134 = scmp.ne.s32.totalorder %s120, %s121
    %p135 = scmp.eq.s32.totalorder %s19, 1
    %p136 = por %p134, %p135
    %p138 = scmp.ne.s32.totalorder %s121, %s137
    %p139 = scmp.eq.s32.totalorder %s19, 0
    %p140 = por %p138, %p139
    %s141 = ssub.s32 %s13, %s20
    %p142 = scmp.eq.s32.totalorder %s141, 0
    %s144 = sadd.s32 %s143, 1
    %s145 = scalar_select %p142, %s143, %s144
    %p148 = pneg %p142
    %p149 = scmp.eq.s32.totalorder %s13, 1
    %p150 = por %p148, %p149
    %p151 = scmp.ne.s32.totalorder %s143, %s146
    %p152 = scmp.eq.s32.totalorder %s13, 0
    %p153 = por %p151, %p152
    %p154 = scmp.ne.s32.totalorder %s143, %s146
    %p155 = scmp.eq.s32.totalorder %s18, 1
    %p156 = por %p154, %p155
    %p157 = scmp.ne.s32.totalorder %s146, %s147
    %p158 = scmp.eq.s32.totalorder %s18, 0
    %p159 = por %p157, %p158
    %p160 = scmp.ne.s32.totalorder %s146, %s147
    %p161 = scmp.eq.s32.totalorder %s19, 1
    %p162 = por %p160, %p161
    %p164 = scmp.ne.s32.totalorder %s147, %s163
    %p165 = scmp.eq.s32.totalorder %s19, 0
    %p166 = por %p164, %p165
    %s167 = ssub.s32 %s13, %s20
    %p168 = scmp.eq.s32.totalorder %s167, 0
    %s170 = sadd.s32 %s169, 1
    %s171 = scalar_select %p168, %s169, %s170
    %p174 = pneg %p168
    %p175 = scmp.eq.s32.totalorder %s13, 1
    %p176 = por %p174, %p175
    %p177 = scmp.ne.s32.totalorder %s169, %s172
    %p178 = scmp.eq.s32.totalorder %s13, 0
    %p179 = por %p177, %p178
    %p180 = scmp.ne.s32.totalorder %s169, %s172
    %p181 = scmp.eq.s32.totalorder %s18, 1
    %p182 = por %p180, %p181
    %p183 = scmp.ne.s32.totalorder %s172, %s173
    %p184 = scmp.eq.s32.totalorder %s18, 0
    %p185 = por %p183, %p184
    %p186 = scmp.ne.s32.totalorder %s172, %s173
    %p187 = scmp.eq.s32.totalorder %s19, 1
    %p188 = por %p186, %p187
    %p190 = scmp.ne.s32.totalorder %s173, %s189
    %p191 = scmp.eq.s32.totalorder %s19, 0
    %p192 = por %p190, %p191
    %p193 = scmp.le.s32.totalorder 1, %s13
    %p194 = scmp.lt.s32.totalorder %s13, 3
    %p195 = pnand %p193, %p194
    %p196 = pneg %p195
    // Predicated region
    $region9: #{up_forward.5} parent=5 // pred_check
      _
    $region10: #{up_forward.5} parent=5 // pred_check_branch
      %198 = sbr.rel (%p195) target = $region12
    $region11: #{up_forward.5} parent=5 // pred_region
      %s199 = ssub.s32 %s13, 1
      // Predicated region
      $region13: #{up_forward.5} parent=11 // pred_check
        %p200 = pneg %p86
      $region14: #{up_forward.5} parent=11 // pred_check_branch
        %202 = sbr.rel (%p200) target = $region16
      $region15: #{up_forward.5} parent=11 // pred_region
        _
      $region16: #{up_forward.5} parent=11 // pred_fallthru
        _
      // Predicated region
      $region17: #{up_forward.5} parent=11 // pred_check
        %p203 = pneg %p107
      $region18: #{up_forward.5} parent=11 // pred_check_branch
        %205 = sbr.rel (%p203) target = $region20
      $region19: #{up_forward.5} parent=11 // pred_region
        _
      $region20: #{up_forward.5} parent=11 // pred_fallthru
        _
    $region12: #{up_forward.5} parent=5 // pred_fallthru
      _
    %p206 = scmp.lt.s32.totalorder %s13, 2
    // Predicated region
    $region21: #{up_forward.5} parent=5 // pred_check
      %p207 = pneg %p206
    $region22: #{up_forward.5} parent=5 // pred_check_branch
      %209 = sbr.rel (%p207) target = $region24
    $region23: #{up_forward.5} parent=5 // pred_region
      // Predicated region
      $region25: #{up_forward.5} parent=23 // pred_check
        %p210 = pneg %p33
      $region26: #{up_forward.5} parent=23 // pred_check_branch
        %212 = sbr.rel (%p210) target = $region28
      $region27: #{up_forward.5} parent=23 // pred_region
        %p213 = scmp.lt.s32.totalorder %s13, 1
        %s214 = scalar_select %p213, %s13, 1
        %s215 = smul.addr %s214, 4
        %s216 = smul.addr %s215, 8
        %s217 = scalar_lea.vmem %s0, %s216
      $region28: #{up_forward.5} parent=23 // pred_fallthru
        _
      // Predicated region
      $region29: #{up_forward.5} parent=23 // pred_check
        %p218 = pneg %p59
      $region30: #{up_forward.5} parent=23 // pred_check_branch
        %220 = sbr.rel (%p218) target = $region32
      $region31: #{up_forward.5} parent=23 // pred_region
        %p221 = scmp.lt.s32.totalorder %s13, 1
        %s222 = scalar_select %p221, %s13, 1
        %s223 = smul.addr %s222, 4
        %s224 = smul.addr %s223, 8
        %s225 = scalar_lea.vmem %s1, %s224
      $region32: #{up_forward.5} parent=23 // pred_fallthru
        _
    $region24: #{up_forward.5} parent=5 // pred_fallthru
      _
    %p226 = scmp.le.s32.totalorder 1, %s13
    %p227 = scmp.lt.s32.totalorder %s13, 3
    %p228 = pnand %p226, %p227
    %p229 = pneg %p228
    // Predicated region
    $region33: #{up_forward.5} parent=5 // pred_check
      _
    $region34: #{up_forward.5} parent=5 // pred_check_branch
      %231 = sbr.rel (%p228) target = $region36
    $region35: #{up_forward.5} parent=5 // pred_region
      %s232 = ssub.s32 %s13, 1
      %p233 = scmp.lt.s32.totalorder %s18, 1
      %s234 = scalar_select %p233, %s18, 1
      %s235 = smul.addr %s234, 4
      %s236 = smul.addr %s235, 8
      %s237 = scalar_lea.vmem %s0, %s236
      %p238 = pneg %p39
      %p239 = pneg %p36
      %p240 = scmp.lt.s32.totalorder %s18, 1
      %s241 = scalar_select %p240, %s18, 1
      %s242 = smul.addr %s241, 4
      %s243 = smul.addr %s242, 8
      %s244 = scalar_lea.vmem %s1, %s243
      %p245 = pneg %p65
      %p246 = pneg %p62
      %p247 = pneg %p86
      %p248 = pneg %p83
      %p249 = pneg %p107
      %p250 = pneg %p104
      %p251 = pneg %p133
      %p252 = pneg %p130
      %p253 = scmp.lt.s32.totalorder %s18, 1
      %s254 = scalar_select %p253, %s18, 1
      %s255 = smul.addr %s254, 3
      %s256 = smul.addr %s255, 8
      %s257 = scalar_lea.vmem %s4, %s256
      %p258 = pneg %p159
      %p259 = pneg %p156
      %p260 = scmp.lt.s32.totalorder %s18, 1
      %s261 = scalar_select %p260, %s18, 1
      %s262 = smul.addr %s261, 8
      %s263 = scalar_lea.vmem %s5, %s262
      %p264 = pneg %p185
      %p265 = pneg %p182
      %p266 = scmp.lt.s32.totalorder %s18, 1
      %s267 = scalar_select %p266, %s18, 1
      %s268 = smul.addr %s267, 8
      %s269 = scalar_lea.vmem %s6, %s268
      %p270 = scmp.lt.s32.totalorder %s18, 1
      %s271 = scalar_select %p270, %s18, 1
      %s272 = smul.addr %s271, 4
      %s273 = smul.addr %s272, 8
      %s274 = scalar_lea.vmem %s0, %s273
      %p275 = scmp.lt.s32.totalorder %s18, 1
      %s276 = scalar_select %p275, %s18, 1
      %s277 = smul.addr %s276, 4
      %s278 = smul.addr %s277, 8
      %s279 = scalar_lea.vmem %s1, %s278
      %p280 = scmp.lt.s32.totalorder %s18, 1
      %s281 = scalar_select %p280, %s18, 1
      %s282 = smul.addr %s281, 3
      %s283 = smul.addr %s282, 8
      %s284 = scalar_lea.vmem %s4, %s283
      %p285 = scmp.lt.s32.totalorder %s18, 1
      %s286 = scalar_select %p285, %s18, 1
      %s287 = smul.addr %s286, 8
      %s288 = scalar_lea.vmem %s5, %s287
      %p289 = scmp.lt.s32.totalorder %s18, 1
      %s290 = scalar_select %p289, %s18, 1
      %s291 = smul.addr %s290, 8
      %s292 = scalar_lea.vmem %s6, %s291
      %v294 = vld [vmem:[%s274] sm:$0xff]
      %v295 = vld [vmem:[%s274 + $0x8] sm:$0xff]
      %v296 = vld [vmem:[%s274 + $0x10] sm:$0xff]
      %v297 = vld [vmem:[%s274 + $0x18] sm:$0xff]
      %v298 = vld [vmem:[%s279] sm:$0xff]
      %v299 = vld [vmem:[%s279 + $0x8] sm:$0xff]
      %v300 = vld [vmem:[%s279 + $0x10] sm:$0xff]
      %v301 = vld [vmem:[%s279 + $0x18] sm:$0xff]
      %306 = vrot.lane.b32.xlu0 %v294, 127
      %v307 = vpop.permute.xlu0 %306
      %308 = vrot.lane.b32.xlu0 %v295, 127
      %v309 = vpop.permute.xlu0 %308
      %310 = vrot.lane.b32.xlu0 %v296, 127
      %v311 = vpop.permute.xlu0 %310
      %312 = vrot.lane.b32.xlu0 %v297, 127
      %v313 = vpop.permute.xlu0 %312
      %vm314 = vcmask 1039360
      %v315 = vsel %vm314, %v307, %v309
      %v316 = vsel %vm314, %v309, %v311
      %v317 = vsel %vm314, %v311, %v313
      %325 = vrot.lane.b32.xlu0 %v298, 127
      %v326 = vpop.permute.xlu0 %325
      %327 = vrot.lane.b32.xlu0 %v299, 127
      %v328 = vpop.permute.xlu0 %327
      %329 = vrot.lane.b32.xlu0 %v300, 127
      %v330 = vpop.permute.xlu0 %329
      %331 = vrot.lane.b32.xlu0 %v301, 127
      %v332 = vpop.permute.xlu0 %331
      %v333 = vsel %vm314, %v326, %v328
      %v334 = vsel %vm314, %v328, %v330
      %v335 = vsel %vm314, %v330, %v332
      %339 = vrot.lane.b32.xlu0 %v294, 126
      %v340 = vpop.permute.xlu0 %339
      %341 = vrot.lane.b32.xlu0 %v295, 126
      %v342 = vpop.permute.xlu0 %341
      %343 = vrot.lane.b32.xlu0 %v296, 126
      %v344 = vpop.permute.xlu0 %343
      %345 = vrot.lane.b32.xlu0 %v297, 126
      %v346 = vpop.permute.xlu0 %345
      %vm347 = vcmask 1031168
      %v348 = vsel %vm347, %v340, %v342
      %v349 = vsel %vm347, %v342, %v344
      %v350 = vsel %vm347, %v344, %v346
      %354 = vrot.lane.b32.xlu0 %v298, 126
      %v355 = vpop.permute.xlu0 %354
      %356 = vrot.lane.b32.xlu0 %v299, 126
      %v357 = vpop.permute.xlu0 %356
      %358 = vrot.lane.b32.xlu0 %v300, 126
      %v359 = vpop.permute.xlu0 %358
      %360 = vrot.lane.b32.xlu0 %v301, 126
      %v361 = vpop.permute.xlu0 %360
      %v362 = vsel %vm347, %v355, %v357
      %v363 = vsel %vm347, %v357, %v359
      %v364 = vsel %vm347, %v359, %v361
      %368 = vrot.lane.b32.xlu0 %v294, 112
      %v369 = vpop.permute.xlu0 %368
      %370 = vrot.lane.b32.xlu0 %v295, 112
      %v371 = vpop.permute.xlu0 %370
      %372 = vrot.lane.b32.xlu0 %v296, 112
      %v373 = vpop.permute.xlu0 %372
      %374 = vrot.lane.b32.xlu0 %v297, 112
      %v375 = vpop.permute.xlu0 %374
      %vm376 = vcmask 916480
      %v377 = vsel %vm376, %v369, %v371
      %v378 = vsel %vm376, %v371, %v373
      %v379 = vsel %vm376, %v373, %v375
      %383 = vrot.lane.b32.xlu0 %v298, 112
      %v384 = vpop.permute.xlu0 %383
      %385 = vrot.lane.b32.xlu0 %v299, 112
      %v386 = vpop.permute.xlu0 %385
      %387 = vrot.lane.b32.xlu0 %v300, 112
      %v388 = vpop.permute.xlu0 %387
      %389 = vrot.lane.b32.xlu0 %v301, 112
      %v390 = vpop.permute.xlu0 %389
      %v391 = vsel %vm376, %v384, %v386
      %v392 = vsel %vm376, %v386, %v388
      %v393 = vsel %vm376, %v388, %v390
      %397 = vrot.lane.b32.xlu0 %v294, 111
      %v398 = vpop.permute.xlu0 %397
      %399 = vrot.lane.b32.xlu0 %v295, 111
      %v400 = vpop.permute.xlu0 %399
      %401 = vrot.lane.b32.xlu0 %v296, 111
      %v402 = vpop.permute.xlu0 %401
      %403 = vrot.lane.b32.xlu0 %v297, 111
      %v404 = vpop.permute.xlu0 %403
      %vm405 = vcmask 908288
      %v406 = vsel %vm405, %v398, %v400
      %v407 = vsel %vm405, %v400, %v402
      %v408 = vsel %vm405, %v402, %v404
      %412 = vrot.lane.b32.xlu0 %v298, 111
      %v413 = vpop.permute.xlu0 %412
      %414 = vrot.lane.b32.xlu0 %v299, 111
      %v415 = vpop.permute.xlu0 %414
      %416 = vrot.lane.b32.xlu0 %v300, 111
      %v417 = vpop.permute.xlu0 %416
      %418 = vrot.lane.b32.xlu0 %v301, 111
      %v419 = vpop.permute.xlu0 %418
      %v420 = vsel %vm405, %v413, %v415
      %v421 = vsel %vm405, %v415, %v417
      %v422 = vsel %vm405, %v417, %v419
      %426 = vrot.lane.b32.xlu0 %v294, 110
      %v427 = vpop.permute.xlu0 %426
      %428 = vrot.lane.b32.xlu0 %v295, 110
      %v429 = vpop.permute.xlu0 %428
      %430 = vrot.lane.b32.xlu0 %v296, 110
      %v431 = vpop.permute.xlu0 %430
      %432 = vrot.lane.b32.xlu0 %v297, 110
      %v433 = vpop.permute.xlu0 %432
      %vm434 = vcmask 900096
      %v435 = vsel %vm434, %v427, %v429
      %v436 = vsel %vm434, %v429, %v431
      %v437 = vsel %vm434, %v431, %v433
      %441 = vrot.lane.b32.xlu0 %v298, 110
      %v442 = vpop.permute.xlu0 %441
      %443 = vrot.lane.b32.xlu0 %v299, 110
      %v444 = vpop.permute.xlu0 %443
      %445 = vrot.lane.b32.xlu0 %v300, 110
      %v446 = vpop.permute.xlu0 %445
      %447 = vrot.lane.b32.xlu0 %v301, 110
      %v448 = vpop.permute.xlu0 %447
      %v449 = vsel %vm434, %v442, %v444
      %v450 = vsel %vm434, %v444, %v446
      %v451 = vsel %vm434, %v446, %v448
      %455 = vrot.lane.b32.xlu0 %v294, 96
      %v456 = vpop.permute.xlu0 %455
      %457 = vrot.lane.b32.xlu0 %v295, 96
      %v458 = vpop.permute.xlu0 %457
      %459 = vrot.lane.b32.xlu0 %v296, 96
      %v460 = vpop.permute.xlu0 %459
      %461 = vrot.lane.b32.xlu0 %v297, 96
      %v462 = vpop.permute.xlu0 %461
      %vm463 = vcmask 785408
      %v464 = vsel %vm463, %v456, %v458
      %v465 = vsel %vm463, %v458, %v460
      %v466 = vsel %vm463, %v460, %v462
      %470 = vrot.lane.b32.xlu0 %v298, 96
      %v471 = vpop.permute.xlu0 %470
      %472 = vrot.lane.b32.xlu0 %v299, 96
      %v473 = vpop.permute.xlu0 %472
      %474 = vrot.lane.b32.xlu0 %v300, 96
      %v475 = vpop.permute.xlu0 %474
      %476 = vrot.lane.b32.xlu0 %v301, 96
      %v477 = vpop.permute.xlu0 %476
      %v478 = vsel %vm463, %v471, %v473
      %v479 = vsel %vm463, %v473, %v475
      %v480 = vsel %vm463, %v475, %v477
      %484 = vrot.lane.b32.xlu0 %v294, 95
      %v485 = vpop.permute.xlu0 %484
      %486 = vrot.lane.b32.xlu0 %v295, 95
      %v487 = vpop.permute.xlu0 %486
      %488 = vrot.lane.b32.xlu0 %v296, 95
      %v489 = vpop.permute.xlu0 %488
      %490 = vrot.lane.b32.xlu0 %v297, 95
      %v491 = vpop.permute.xlu0 %490
      %vm492 = vcmask 777216
      %v493 = vsel %vm492, %v485, %v487
      %v494 = vsel %vm492, %v487, %v489
      %v495 = vsel %vm492, %v489, %v491
      %499 = vrot.lane.b32.xlu0 %v298, 95
      %v500 = vpop.permute.xlu0 %499
      %501 = vrot.lane.b32.xlu0 %v299, 95
      %v502 = vpop.permute.xlu0 %501
      %503 = vrot.lane.b32.xlu0 %v300, 95
      %v504 = vpop.permute.xlu0 %503
      %505 = vrot.lane.b32.xlu0 %v301, 95
      %v506 = vpop.permute.xlu0 %505
      %v507 = vsel %vm492, %v500, %v502
      %v508 = vsel %vm492, %v502, %v504
      %v509 = vsel %vm492, %v504, %v506
      %513 = vrot.lane.b32.xlu0 %v294, 94
      %v514 = vpop.permute.xlu0 %513
      %515 = vrot.lane.b32.xlu0 %v295, 94
      %v516 = vpop.permute.xlu0 %515
      %517 = vrot.lane.b32.xlu0 %v296, 94
      %v518 = vpop.permute.xlu0 %517
      %519 = vrot.lane.b32.xlu0 %v297, 94
      %v520 = vpop.permute.xlu0 %519
      %521 = vrot.lane.b32.xlu0 %v298, 94
      %v522 = vpop.permute.xlu0 %521
      %523 = vrot.lane.b32.xlu0 %v299, 94
      %v524 = vpop.permute.xlu0 %523
      %525 = vrot.lane.b32.xlu0 %v300, 94
      %v526 = vpop.permute.xlu0 %525
      %527 = vrot.lane.b32.xlu0 %v301, 94
      %v528 = vpop.permute.xlu0 %527
      %vm529 = vcmask 769024
      %v530 = vsel %vm529, %v514, %v516
      %v531 = vsel %vm529, %v516, %v518
      %v532 = vsel %vm529, %v518, %v520
      %v533 = vsel %vm529, %v522, %v524
      %v534 = vsel %vm529, %v524, %v526
      %v535 = vsel %vm529, %v526, %v528
      %v542 = vpack.c.bf16 %v298, %v294
      %v543 = vpack.c.bf16 %v299, %v295
      %v544 = vpack.c.bf16 %v300, %v296
      %v545 = vpack.c.bf16 %v333, %v315
      %v546 = vpack.c.bf16 %v334, %v316
      %v547 = vpack.c.bf16 %v335, %v317
      %v548 = vpack.c.bf16 %v362, %v348
      %v549 = vpack.c.bf16 %v363, %v349
      %v550 = vpack.c.bf16 %v364, %v350
      %v551 = vpack.c.bf16 %v391, %v377
      %v552 = vpack.c.bf16 %v392, %v378
      %v553 = vpack.c.bf16 %v393, %v379
      %v554 = vpack.c.bf16 %v420, %v406
      %v555 = vpack.c.bf16 %v421, %v407
      %v556 = vpack.c.bf16 %v422, %v408
      %v557 = vpack.c.bf16 %v449, %v435
      %v558 = vpack.c.bf16 %v450, %v436
      %v559 = vpack.c.bf16 %v451, %v437
      %v560 = vpack.c.bf16 %v478, %v464
      %v561 = vpack.c.bf16 %v479, %v465
      %v562 = vpack.c.bf16 %v480, %v466
      %v563 = vpack.c.bf16 %v507, %v493
      %v564 = vpack.c.bf16 %v508, %v494
      %v565 = vpack.c.bf16 %v509, %v495
      %v566 = vpack.c.bf16 %v533, %v530
      %v567 = vpack.c.bf16 %v534, %v531
      %v568 = vpack.c.bf16 %v535, %v532
      %v569 = vld [vmem:[%s2] sm:$0xff]
      %v571 = vunpack.c.l.b16 %v569
      %v572 = vunpack.c.h.b16 %v569
      %v573 = vpack.c.b16 %v571, %v571
      %v574 = vpack.c.b16 %v572, %v572
      %vm576 = vcmask 130048
      %v578 = vsel %vm576, %v574, 0
      %580 = vmatprep.subr.bf16.mxu0 %v543
      %581 = vmatpush1.bf16.msra.mxu0 %v542
      %582 = vmatprep.subr.bf16.mxu0 %v546
      %583 = vmatpush1.bf16.msra.mxu0 %v545
      %584 = vmatprep.subr.bf16.mxu0 %v549
      %585 = vmatpush1.bf16.msra.mxu0 %v548
      %586 = vmatprep.subr.bf16.mxu0 %v552
      %587 = vmatpush1.bf16.msra.mxu0 %v551
      %588 = vmatprep.subr.bf16.mxu0 %v555
      %589 = vmatpush1.bf16.msra.mxu0 %v554
      %590 = vmatprep.subr.bf16.mxu0 %v558
      %591 = vmatpush1.bf16.msra.mxu0 %v557
      %592 = vmatprep.subr.bf16.mxu0 %v561
      %593 = vmatpush1.bf16.msra.mxu0 %v560
      %594 = vmatprep.subr.bf16.mxu0 %v564
      %595 = vmatpush1.bf16.msra.mxu0 %v563
      %596 = vmatprep.subr.bf16.mxu0 %v567
      %597 = vmatpush1.bf16.msra.mxu0 %v566
      %598 = vmatprep.subr.bf16.mxu0 0
      %599 = vmatpush1.bf16.msra.mxu0 0
      %600 = vmatprep.subr.bf16.mxu0 0
      %601 = vmatpush1.bf16.msra.mxu0 0
      %602 = vmatprep.subr.bf16.mxu0 0
      %603 = vmatpush1.bf16.msra.mxu0 0
      %604 = vmatprep.subr.bf16.mxu0 0
      %605 = vmatpush1.bf16.msra.mxu0 0
      %606 = vmatprep.subr.bf16.mxu0 0
      %607 = vmatpush1.bf16.msra.mxu0 0
      %608 = vmatprep.subr.bf16.mxu0 0
      %609 = vmatpush1.bf16.msra.mxu0 0
      %610 = vmatprep.subr.bf16.mxu0 0
      %611 = vmatpush1.bf16.msra.mxu0 0
      %612 = vmatprep.mubr.bf16.mxu0 %v578
      %613 = vmatmul.mubr.bf16.gmra.mrb[0].mxu0 %v573
      %v614 = vpop.f32.mrb[0].mxu0
      %v615 = vadd.f32 0.0, %v614
      %v616 = vpop.f32.mrb[0].mxu0
      %v617 = vadd.f32 0.0, %v616
      %v618 = vpop.f32.mrb[0].mxu0
      %v619 = vpop.f32.mrb[0].mxu0
      %620 = vdwg.mxu0
      %621 = vmatprep.subr.bf16.mxu0 0
      %622 = vmatpush1.bf16.msra.mxu0 %v544
      %623 = vmatprep.subr.bf16.mxu0 0
      %624 = vmatpush1.bf16.msra.mxu0 %v547
      %625 = vmatprep.subr.bf16.mxu0 0
      %626 = vmatpush1.bf16.msra.mxu0 %v550
      %627 = vmatprep.subr.bf16.mxu0 0
      %628 = vmatpush1.bf16.msra.mxu0 %v553
      %629 = vmatprep.subr.bf16.mxu0 0
      %630 = vmatpush1.bf16.msra.mxu0 %v556
      %631 = vmatprep.subr.bf16.mxu0 0
      %632 = vmatpush1.bf16.msra.mxu0 %v559
      %633 = vmatprep.subr.bf16.mxu0 0
      %634 = vmatpush1.bf16.msra.mxu0 %v562
      %635 = vmatprep.subr.bf16.mxu0 0
      %636 = vmatpush1.bf16.msra.mxu0 %v565
      %637 = vmatprep.subr.bf16.mxu0 0
      %638 = vmatpush1.bf16.msra.mxu0 %v568
      %639 = vmatprep.subr.bf16.mxu0 0
      %640 = vmatpush1.bf16.msra.mxu0 0
      %641 = vmatprep.subr.bf16.mxu0 0
      %642 = vmatpush1.bf16.msra.mxu0 0
      %643 = vmatprep.subr.bf16.mxu0 0
      %644 = vmatpush1.bf16.msra.mxu0 0
      %645 = vmatprep.subr.bf16.mxu0 0
      %646 = vmatpush1.bf16.msra.mxu0 0
      %647 = vmatprep.subr.bf16.mxu0 0
      %648 = vmatpush1.bf16.msra.mxu0 0
      %649 = vmatprep.subr.bf16.mxu0 0
      %650 = vmatpush1.bf16.msra.mxu0 0
      %651 = vmatprep.subr.bf16.mxu0 0
      %652 = vmatpush1.bf16.msra.mxu0 0
      %653 = vmatprep.mubr.bf16.mxu0 %v578
      %654 = vmatmul.mubr.bf16.gmra.mrb[0].mxu0 %v573
      %v655 = vpop.f32.mrb[0].mxu0
      %v656 = vadd.f32 0.0, %v655
      %v657 = vpop.f32.mrb[0].mxu0
      %v658 = vpop.f32.mrb[0].mxu0
      %v659 = vpop.f32.mrb[0].mxu0
      %660 = vdwg.mxu0
      %661 = vst [vmem:[%s284] sm:$0xff] %v615
      %662 = vst [vmem:[%s284 + $0x8] sm:$0xff] %v617
      %663 = vst [vmem:[%s284 + $0x10] sm:$0xff] %v656
      %v664 = vld [vmem:[%s3] sm:$0x7]
      %v666 = vlaneseq
      %v667 = vshrl.u32 %v666, 7
      %v668 = vsub.s32 0, %v667
      %v669 = vrot.slane %v664, %v668
      %v670 = vlaneseq
      %v671 = vshrl.u32 %v670, 7
      %v672 = vsub.s32 1, %v671
      %v673 = vrot.slane %v664, %v672
      %v674 = vlaneseq
      %v675 = vshrl.u32 %v674, 7
      %v676 = vsub.s32 2, %v675
      %v677 = vrot.slane %v664, %v676
      %v681 = vmul.f32 %v615, %v669
      %v682 = vmul.f32 %v617, %v673
      %v683 = vmul.f32 %v656, %v677
      %v684 = vadd.f32 %v681, %v682
      %v685 = vadd.f32 %v684, %v683
      %686 = vadd.xlane.f32.xlu0 %v685
      %v687 = vpop.xlane.xlu0 %686
      %vm688 = vcmask 7168
      %689 = vst.msk [vmem:[%s288] sm:$0xff] %vm688, %v687
      %v690 = vmul.f32 %v615, %v615
      %v691 = vmul.f32 %v617, %v617
      %v692 = vmul.f32 %v656, %v656
      %v693 = vmul.f32 %v690, %v669
      %v694 = vmul.f32 %v691, %v673
      %v695 = vmul.f32 %v692, %v677
      %v696 = vadd.f32 %v693, %v694
      %v697 = vadd.f32 %v696, %v695
      %698 = vadd.xlane.f32.xlu0 %v697
      %v699 = vpop.xlane.xlu0 %698
      %700 = vst.msk [vmem:[%s292] sm:$0xff] %vm688, %v699
      %p701 = scmp.lt.s32.totalorder %s18, 1
      %s702 = scalar_select %p701, %s18, 1
      %s703 = smul.addr %s702, 3
      %s704 = smul.addr %s703, 8
      %s705 = scalar_lea.vmem %s4, %s704
      %p706 = scmp.lt.s32.totalorder %s18, 1
      %s707 = scalar_select %p706, %s18, 1
      %s708 = smul.addr %s707, 8
      %s709 = scalar_lea.vmem %s5, %s708
      %p710 = scmp.lt.s32.totalorder %s18, 1
      %s711 = scalar_select %p710, %s18, 1
      %s712 = smul.addr %s711, 8
      %s713 = scalar_lea.vmem %s6, %s712
      // Predicated region
      $region37: #{up_forward.5} parent=35 // pred_check
        %p714 = pneg %p130
      $region38: #{up_forward.5} parent=35 // pred_check_branch
        %716 = sbr.rel (%p714) target = $region40
      $region39: #{up_forward.5} parent=35 // pred_region
        _
      $region40: #{up_forward.5} parent=35 // pred_fallthru
        _
      // Predicated region
      $region41: #{up_forward.5} parent=35 // pred_check
        %p717 = pneg %p156
      $region42: #{up_forward.5} parent=35 // pred_check_branch
        %719 = sbr.rel (%p717) target = $region44
      $region43: #{up_forward.5} parent=35 // pred_region
        _
      $region44: #{up_forward.5} parent=35 // pred_fallthru
        _
      // Predicated region
      $region45: #{up_forward.5} parent=35 // pred_check
        %p720 = pneg %p182
      $region46: #{up_forward.5} parent=35 // pred_check_branch
        %722 = sbr.rel (%p720) target = $region48
      $region47: #{up_forward.5} parent=35 // pred_region
        _
      $region48: #{up_forward.5} parent=35 // pred_fallthru
        _
    $region36: #{up_forward.5} parent=5 // pred_fallthru
      _
    %p723 = scmp.le.s32.totalorder 2, %s13
    // Predicated region
    $region49: #{up_forward.5} parent=5 // pred_check
      %p724 = pneg %p723
    $region50: #{up_forward.5} parent=5 // pred_check_branch
      %726 = sbr.rel (%p724) target = $region52
    $region51: #{up_forward.5} parent=5 // pred_region
      %s727 = ssub.s32 %s13, 2
      // Predicated region
      $region53: #{up_forward.5} parent=51 // pred_check
        %p728 = pneg %p136
      $region54: #{up_forward.5} parent=51 // pred_check_branch
        %730 = sbr.rel (%p728) target = $region56
      $region55: #{up_forward.5} parent=51 // pred_region
        %p731 = scmp.lt.s32.totalorder %s19, 1
        %s732 = scalar_select %p731, %s19, 1
        %s733 = smul.addr %s732, 3
        %s734 = smul.addr %s733, 8
        %s735 = scalar_lea.vmem %s4, %s734
      $region56: #{up_forward.5} parent=51 // pred_fallthru
        _
      // Predicated region
      $region57: #{up_forward.5} parent=51 // pred_check
        %p736 = pneg %p162
      $region58: #{up_forward.5} parent=51 // pred_check_branch
        %738 = sbr.rel (%p736) target = $region60
      $region59: #{up_forward.5} parent=51 // pred_region
        %p739 = scmp.lt.s32.totalorder %s19, 1
        %s740 = scalar_select %p739, %s19, 1
        %s741 = smul.addr %s740, 8
        %s742 = scalar_lea.vmem %s5, %s741
      $region60: #{up_forward.5} parent=51 // pred_fallthru
        _
      // Predicated region
      $region61: #{up_forward.5} parent=51 // pred_check
        %p743 = pneg %p188
      $region62: #{up_forward.5} parent=51 // pred_check_branch
        %745 = sbr.rel (%p743) target = $region64
      $region63: #{up_forward.5} parent=51 // pred_region
        %p746 = scmp.lt.s32.totalorder %s19, 1
        %s747 = scalar_select %p746, %s19, 1
        %s748 = smul.addr %s747, 8
        %s749 = scalar_lea.vmem %s6, %s748
      $region64: #{up_forward.5} parent=51 // pred_fallthru
        _
    $region52: #{up_forward.5} parent=5 // pred_fallthru
      _
  $region6: #{up_forward.5} parent=0 // loop_footer
    %s17 = sadd.s32 1, %s13
  $region7: #{up_forward.5} parent=0 // loop_footer_branch
    %12 = sbr.rel target = $region3
  $region8: #{up_forward.5} parent=0 // loop_exit
    _

// kernel: up_forward.6
$region0: #{up_forward.6}
  #allocation0 [shape = 'u32[]', space=smem, size = 0x4, offset = 0x4, fixed_abs, tag = 'smem constant byte address 0x4 - core index']
  #allocation1 [shape = 'u32[144,128]{1,0:T(1,128)}', space=vmem, size = 0x12000, scoped, tag = 'internal scratch']
  %s0 = inlined_call_operand.vmem [shape: f32[2,8,384], index: 0, kind: input, shape index: {}]
  %s1 = inlined_call_operand.vmem [shape: f32[8,1], index: 1, kind: input, shape index: {}]
  %s2 = inlined_call_operand.vmem [shape: f32[8,1], index: 2, kind: input, shape index: {}]
  %s3 = inlined_call_operand.vmem [shape: bf16[8,72], index: 3, kind: input, shape index: {}]
  %s4 = inlined_call_operand.vmem [shape: f32[1,256], index: 4, kind: input, shape index: {}]
  %s5 = inlined_call_operand.vmem [shape: f32[2,8,256], index: 5, kind: output, shape index: {0}]
  %s6 = inlined_call_operand.vmem [shape: f32[2,8,1], index: 6, kind: output, shape index: {1}]
  %s7 = inlined_call_operand.vmem [shape: f32[2,8,1], index: 7, kind: output, shape index: {2}]
  %8 = xla_tuple %s5, %s6, %s7
  %s9 = sld [smem:[#allocation0]]
  $region69: #{up_forward.6} parent=0
    _
  %s11 = ssub.s32 1, %s9
  %s12 = scalar_select 0, %s11, %s9
  loop: start=0, step=1, limit=4
  $region2: #{up_forward.6} parent=0 // loop_pre_header
    _
  $region3: #{up_forward.6} parent=0 // loop_header
    %s14 = sphi 0, %s18
    %p15 = scmp.ge.s32.totalorder %s14, 4
    %s24 = sphi 0, %s26
    %s27 = sphi 0, %s24
    %s28 = sphi 0, %s27
    %s44 = sphi 0, %s28
    %s48 = sphi 0, %s48
    %s50 = sphi 0, %s48
    %s51 = sphi 0, %s50
    %s65 = sphi 0, %s51
    %s69 = sphi 0, %s69
    %s71 = sphi 0, %s69
    %s72 = sphi 0, %s71
    %s86 = sphi 0, %s72
    %s90 = sphi 0, %s90
    %s92 = sphi 0, %s90
    %s93 = sphi 0, %s92
    %s107 = sphi 0, %s93
    %s111 = sphi 0, %s111
    %s113 = sphi 0, %s111
    %s114 = sphi 0, %s113
    %s128 = sphi 0, %s114
    %s134 = sphi 0, %s136
    %s137 = sphi 0, %s134
    %s138 = sphi 0, %s137
    %s154 = sphi 0, %s138
    %s160 = sphi 0, %s162
    %s163 = sphi 0, %s160
    %s164 = sphi 0, %s163
    %s180 = sphi 0, %s164
    %s186 = sphi 0, %s188
    %s189 = sphi 0, %s186
    %s190 = sphi 0, %s189
    %s206 = sphi 0, %s190
  $region4: #{up_forward.6} parent=0 // loop_header_branch
    %17 = sbr.rel (%p15) target = $region8
  $region5: #{up_forward.6} parent=0 // loop_body
    %s19 = ssub.s32 %s14, 1
    %s20 = ssub.s32 %s14, 2
    %s21 = sadd.s32 %s14, 1
    %s22 = ssub.s32 %s14, %s21
    %p23 = scmp.eq.s32.totalorder %s22, 0
    %s25 = sadd.s32 %s24, 1
    %s26 = scalar_select %p23, %s24, %s25
    %p29 = pneg %p23
    %p30 = scmp.eq.s32.totalorder %s14, 1
    %p31 = por %p29, %p30
    %p32 = scmp.ne.s32.totalorder %s24, %s27
    %p33 = scmp.eq.s32.totalorder %s14, 0
    %p34 = por %p32, %p33
    %p35 = scmp.ne.s32.totalorder %s24, %s27
    %p36 = scmp.eq.s32.totalorder %s19, 1
    %p37 = por %p35, %p36
    %p38 = scmp.ne.s32.totalorder %s27, %s28
    %p39 = scmp.eq.s32.totalorder %s19, 0
    %p40 = por %p38, %p39
    %p41 = scmp.ne.s32.totalorder %s27, %s28
    %p42 = scmp.eq.s32.totalorder %s20, 1
    %p43 = por %p41, %p42
    %p45 = scmp.ne.s32.totalorder %s28, %s44
    %p46 = scmp.eq.s32.totalorder %s20, 0
    %p47 = por %p45, %p46
    %s49 = sadd.s32 %s48, 1
    %p52 = scmp.eq.s32.totalorder %s14, 1
    %p53 = scmp.ne.s32.totalorder %s48, %s50
    %p54 = scmp.eq.s32.totalorder %s14, 0
    %p55 = por %p53, %p54
    %p56 = scmp.ne.s32.totalorder %s48, %s50
    %p57 = scmp.eq.s32.totalorder %s19, 1
    %p58 = por %p56, %p57
    %p59 = scmp.ne.s32.totalorder %s50, %s51
    %p60 = scmp.eq.s32.totalorder %s19, 0
    %p61 = por %p59, %p60
    %p62 = scmp.ne.s32.totalorder %s50, %s51
    %p63 = scmp.eq.s32.totalorder %s20, 1
    %p64 = por %p62, %p63
    %p66 = scmp.ne.s32.totalorder %s51, %s65
    %p67 = scmp.eq.s32.totalorder %s20, 0
    %p68 = por %p66, %p67
    %s70 = sadd.s32 %s69, 1
    %p73 = scmp.eq.s32.totalorder %s14, 1
    %p74 = scmp.ne.s32.totalorder %s69, %s71
    %p75 = scmp.eq.s32.totalorder %s14, 0
    %p76 = por %p74, %p75
    %p77 = scmp.ne.s32.totalorder %s69, %s71
    %p78 = scmp.eq.s32.totalorder %s19, 1
    %p79 = por %p77, %p78
    %p80 = scmp.ne.s32.totalorder %s71, %s72
    %p81 = scmp.eq.s32.totalorder %s19, 0
    %p82 = por %p80, %p81
    %p83 = scmp.ne.s32.totalorder %s71, %s72
    %p84 = scmp.eq.s32.totalorder %s20, 1
    %p85 = por %p83, %p84
    %p87 = scmp.ne.s32.totalorder %s72, %s86
    %p88 = scmp.eq.s32.totalorder %s20, 0
    %p89 = por %p87, %p88
    %s91 = sadd.s32 %s90, 1
    %p94 = scmp.eq.s32.totalorder %s14, 1
    %p95 = scmp.ne.s32.totalorder %s90, %s92
    %p96 = scmp.eq.s32.totalorder %s14, 0
    %p97 = por %p95, %p96
    %p98 = scmp.ne.s32.totalorder %s90, %s92
    %p99 = scmp.eq.s32.totalorder %s19, 1
    %p100 = por %p98, %p99
    %p101 = scmp.ne.s32.totalorder %s92, %s93
    %p102 = scmp.eq.s32.totalorder %s19, 0
    %p103 = por %p101, %p102
    %p104 = scmp.ne.s32.totalorder %s92, %s93
    %p105 = scmp.eq.s32.totalorder %s20, 1
    %p106 = por %p104, %p105
    %p108 = scmp.ne.s32.totalorder %s93, %s107
    %p109 = scmp.eq.s32.totalorder %s20, 0
    %p110 = por %p108, %p109
    %s112 = sadd.s32 %s111, 1
    %p115 = scmp.eq.s32.totalorder %s14, 1
    %p116 = scmp.ne.s32.totalorder %s111, %s113
    %p117 = scmp.eq.s32.totalorder %s14, 0
    %p118 = por %p116, %p117
    %p119 = scmp.ne.s32.totalorder %s111, %s113
    %p120 = scmp.eq.s32.totalorder %s19, 1
    %p121 = por %p119, %p120
    %p122 = scmp.ne.s32.totalorder %s113, %s114
    %p123 = scmp.eq.s32.totalorder %s19, 0
    %p124 = por %p122, %p123
    %p125 = scmp.ne.s32.totalorder %s113, %s114
    %p126 = scmp.eq.s32.totalorder %s20, 1
    %p127 = por %p125, %p126
    %p129 = scmp.ne.s32.totalorder %s114, %s128
    %p130 = scmp.eq.s32.totalorder %s20, 0
    %p131 = por %p129, %p130
    %s132 = ssub.s32 %s14, %s21
    %p133 = scmp.eq.s32.totalorder %s132, 0
    %s135 = sadd.s32 %s134, 1
    %s136 = scalar_select %p133, %s134, %s135
    %p139 = pneg %p133
    %p140 = scmp.eq.s32.totalorder %s14, 1
    %p141 = por %p139, %p140
    %p142 = scmp.ne.s32.totalorder %s134, %s137
    %p143 = scmp.eq.s32.totalorder %s14, 0
    %p144 = por %p142, %p143
    %p145 = scmp.ne.s32.totalorder %s134, %s137
    %p146 = scmp.eq.s32.totalorder %s19, 1
    %p147 = por %p145, %p146
    %p148 = scmp.ne.s32.totalorder %s137, %s138
    %p149 = scmp.eq.s32.totalorder %s19, 0
    %p150 = por %p148, %p149
    %p151 = scmp.ne.s32.totalorder %s137, %s138
    %p152 = scmp.eq.s32.totalorder %s20, 1
    %p153 = por %p151, %p152
    %p155 = scmp.ne.s32.totalorder %s138, %s154
    %p156 = scmp.eq.s32.totalorder %s20, 0
    %p157 = por %p155, %p156
    %s158 = ssub.s32 %s14, %s21
    %p159 = scmp.eq.s32.totalorder %s158, 0
    %s161 = sadd.s32 %s160, 1
    %s162 = scalar_select %p159, %s160, %s161
    %p165 = pneg %p159
    %p166 = scmp.eq.s32.totalorder %s14, 1
    %p167 = por %p165, %p166
    %p168 = scmp.ne.s32.totalorder %s160, %s163
    %p169 = scmp.eq.s32.totalorder %s14, 0
    %p170 = por %p168, %p169
    %p171 = scmp.ne.s32.totalorder %s160, %s163
    %p172 = scmp.eq.s32.totalorder %s19, 1
    %p173 = por %p171, %p172
    %p174 = scmp.ne.s32.totalorder %s163, %s164
    %p175 = scmp.eq.s32.totalorder %s19, 0
    %p176 = por %p174, %p175
    %p177 = scmp.ne.s32.totalorder %s163, %s164
    %p178 = scmp.eq.s32.totalorder %s20, 1
    %p179 = por %p177, %p178
    %p181 = scmp.ne.s32.totalorder %s164, %s180
    %p182 = scmp.eq.s32.totalorder %s20, 0
    %p183 = por %p181, %p182
    %s184 = ssub.s32 %s14, %s21
    %p185 = scmp.eq.s32.totalorder %s184, 0
    %s187 = sadd.s32 %s186, 1
    %s188 = scalar_select %p185, %s186, %s187
    %p191 = pneg %p185
    %p192 = scmp.eq.s32.totalorder %s14, 1
    %p193 = por %p191, %p192
    %p194 = scmp.ne.s32.totalorder %s186, %s189
    %p195 = scmp.eq.s32.totalorder %s14, 0
    %p196 = por %p194, %p195
    %p197 = scmp.ne.s32.totalorder %s186, %s189
    %p198 = scmp.eq.s32.totalorder %s19, 1
    %p199 = por %p197, %p198
    %p200 = scmp.ne.s32.totalorder %s189, %s190
    %p201 = scmp.eq.s32.totalorder %s19, 0
    %p202 = por %p200, %p201
    %p203 = scmp.ne.s32.totalorder %s189, %s190
    %p204 = scmp.eq.s32.totalorder %s20, 1
    %p205 = por %p203, %p204
    %p207 = scmp.ne.s32.totalorder %s190, %s206
    %p208 = scmp.eq.s32.totalorder %s20, 0
    %p209 = por %p207, %p208
    %p210 = scmp.le.s32.totalorder 1, %s14
    %p211 = scmp.lt.s32.totalorder %s14, 3
    %p212 = pnand %p210, %p211
    %p213 = pneg %p212
    // Predicated region
    $region9: #{up_forward.6} parent=5 // pred_check
      _
    $region10: #{up_forward.6} parent=5 // pred_check_branch
      %215 = sbr.rel (%p212) target = $region12
    $region11: #{up_forward.6} parent=5 // pred_region
      %s216 = ssub.s32 %s14, 1
      // Predicated region
      $region13: #{up_forward.6} parent=11 // pred_check
        %p217 = pneg %p61
      $region14: #{up_forward.6} parent=11 // pred_check_branch
        %219 = sbr.rel (%p217) target = $region16
      $region15: #{up_forward.6} parent=11 // pred_region
        _
      $region16: #{up_forward.6} parent=11 // pred_fallthru
        _
      // Predicated region
      $region17: #{up_forward.6} parent=11 // pred_check
        %p220 = pneg %p82
      $region18: #{up_forward.6} parent=11 // pred_check_branch
        %222 = sbr.rel (%p220) target = $region20
      $region19: #{up_forward.6} parent=11 // pred_region
        _
      $region20: #{up_forward.6} parent=11 // pred_fallthru
        _
      // Predicated region
      $region21: #{up_forward.6} parent=11 // pred_check
        %p223 = pneg %p103
      $region22: #{up_forward.6} parent=11 // pred_check_branch
        %225 = sbr.rel (%p223) target = $region24
      $region23: #{up_forward.6} parent=11 // pred_region
        _
      $region24: #{up_forward.6} parent=11 // pred_fallthru
        _
      // Predicated region
      $region25: #{up_forward.6} parent=11 // pred_check
        %p226 = pneg %p124
      $region26: #{up_forward.6} parent=11 // pred_check_branch
        %228 = sbr.rel (%p226) target = $region28
      $region27: #{up_forward.6} parent=11 // pred_region
        _
      $region28: #{up_forward.6} parent=11 // pred_fallthru
        _
    $region12: #{up_forward.6} parent=5 // pred_fallthru
      _
    %p229 = scmp.lt.s32.totalorder %s14, 2
    // Predicated region
    $region29: #{up_forward.6} parent=5 // pred_check
      %p230 = pneg %p229
    $region30: #{up_forward.6} parent=5 // pred_check_branch
      %232 = sbr.rel (%p230) target = $region32
    $region31: #{up_forward.6} parent=5 // pred_region
      // Predicated region
      $region33: #{up_forward.6} parent=31 // pred_check
        %p233 = pneg %p34
      $region34: #{up_forward.6} parent=31 // pred_check_branch
        %235 = sbr.rel (%p233) target = $region36
      $region35: #{up_forward.6} parent=31 // pred_region
        %p236 = scmp.lt.s32.totalorder %s14, 1
        %s237 = scalar_select %p236, %s14, 1
        %s238 = smul.addr %s237, 3
        %s239 = smul.addr %s238, 8
        %s240 = scalar_lea.vmem %s0, %s239
      $region36: #{up_forward.6} parent=31 // pred_fallthru
        _
    $region32: #{up_forward.6} parent=5 // pred_fallthru
      _
    %p241 = scmp.le.s32.totalorder 1, %s14
    %p242 = scmp.lt.s32.totalorder %s14, 3
    %p243 = pnand %p241, %p242
    %p244 = pneg %p243
    // Predicated region
    $region37: #{up_forward.6} parent=5 // pred_check
      _
    $region38: #{up_forward.6} parent=5 // pred_check_branch
      %246 = sbr.rel (%p243) target = $region40
    $region39: #{up_forward.6} parent=5 // pred_region
      %s247 = ssub.s32 %s14, 1
      %p248 = scmp.lt.s32.totalorder %s19, 1
      %s249 = scalar_select %p248, %s19, 1
      %s250 = smul.addr %s249, 3
      %s251 = smul.addr %s250, 8
      %s252 = scalar_lea.vmem %s0, %s251
      %p253 = pneg %p40
      %p254 = pneg %p37
      %p255 = pneg %p61
      %p256 = pneg %p58
      %p257 = pneg %p82
      %p258 = pneg %p79
      %p259 = pneg %p103
      %p260 = pneg %p100
      %p261 = pneg %p124
      %p262 = pneg %p121
      %p263 = pneg %p150
      %p264 = pneg %p147
      %p265 = scmp.lt.s32.totalorder %s19, 1
      %s266 = scalar_select %p265, %s19, 1
      %s267 = smul.addr %s266, 2
      %s268 = smul.addr %s267, 8
      %s269 = scalar_lea.vmem %s5, %s268
      %p270 = pneg %p176
      %p271 = pneg %p173
      %p272 = scmp.lt.s32.totalorder %s19, 1
      %s273 = scalar_select %p272, %s19, 1
      %s274 = smul.addr %s273, 8
      %s275 = scalar_lea.vmem %s6, %s274
      %p276 = pneg %p202
      %p277 = pneg %p199
      %p278 = scmp.lt.s32.totalorder %s19, 1
      %s279 = scalar_select %p278, %s19, 1
      %s280 = smul.addr %s279, 8
      %s281 = scalar_lea.vmem %s7, %s280
      %p282 = scmp.lt.s32.totalorder %s19, 1
      %s283 = scalar_select %p282, %s19, 1
      %s284 = smul.addr %s283, 3
      %s285 = smul.addr %s284, 8
      %s286 = scalar_lea.vmem %s0, %s285
      %p287 = scmp.lt.s32.totalorder %s19, 1
      %s288 = scalar_select %p287, %s19, 1
      %s289 = smul.addr %s288, 2
      %s290 = smul.addr %s289, 8
      %s291 = scalar_lea.vmem %s5, %s290
      %p292 = scmp.lt.s32.totalorder %s19, 1
      %s293 = scalar_select %p292, %s19, 1
      %s294 = smul.addr %s293, 8
      %s295 = scalar_lea.vmem %s6, %s294
      %p296 = scmp.lt.s32.totalorder %s19, 1
      %s297 = scalar_select %p296, %s19, 1
      %s298 = smul.addr %s297, 8
      %s299 = scalar_lea.vmem %s7, %s298
      %v301 = vld [vmem:[%s286] sm:$0xff]
      %v302 = vld [vmem:[%s286 + $0x8] sm:$0xff]
      %v303 = vld [vmem:[%s286 + $0x10] sm:$0xff]
      %v304 = vld [vmem:[%s1] sm:$0xff]
      %306 = vset.pattern.permute.xlu0 0
      %307 = vperm.xlu0 %306, %v304
      %v308 = vpop.permute.xlu0 %307
      %v310 = vmul.f32 %v301, %v308
      %v311 = vmul.f32 %v302, %v308
      %v312 = vmul.f32 %v303, %v308
      %v313 = vld [vmem:[%s2] sm:$0xff]
      %315 = vset.pattern.permute.xlu0 0
      %316 = vperm.xlu0 %315, %v313
      %v317 = vpop.permute.xlu0 %316
      %v319 = vadd.f32 %v310, %v317
      %v320 = vadd.f32 %v311, %v317
      %v321 = vadd.f32 %v312, %v317
      %v322 = vmax.f32 %v319, 0.0
      %v323 = vmax.f32 %v320, 0.0
      %v324 = vmax.f32 %v321, 0.0
      %328 = vrot.lane.b32.xlu0 %v322, 127
      %v329 = vpop.permute.xlu0 %328
      %330 = vrot.lane.b32.xlu0 %v323, 127
      %v331 = vpop.permute.xlu0 %330
      %332 = vrot.lane.b32.xlu0 %v324, 127
      %v333 = vpop.permute.xlu0 %332
      %vm334 = vcmask 1039360
      %v335 = vsel %vm334, %v329, %v331
      %v336 = vsel %vm334, %v331, %v333
      %339 = vrot.lane.b32.xlu0 %v322, 126
      %v340 = vpop.permute.xlu0 %339
      %341 = vrot.lane.b32.xlu0 %v323, 126
      %v342 = vpop.permute.xlu0 %341
      %343 = vrot.lane.b32.xlu0 %v324, 126
      %v344 = vpop.permute.xlu0 %343
      %vm345 = vcmask 1031168
      %v346 = vsel %vm345, %v340, %v342
      %v347 = vsel %vm345, %v342, %v344
      %350 = vrot.lane.b32.xlu0 %v322, 112
      %v351 = vpop.permute.xlu0 %350
      %352 = vrot.lane.b32.xlu0 %v323, 112
      %v353 = vpop.permute.xlu0 %352
      %354 = vrot.lane.b32.xlu0 %v324, 112
      %v355 = vpop.permute.xlu0 %354
      %vm356 = vcmask 916480
      %v357 = vsel %vm356, %v351, %v353
      %v358 = vsel %vm356, %v353, %v355
      %361 = vrot.lane.b32.xlu0 %v322, 111
      %v362 = vpop.permute.xlu0 %361
      %363 = vrot.lane.b32.xlu0 %v323, 111
      %v364 = vpop.permute.xlu0 %363
      %365 = vrot.lane.b32.xlu0 %v324, 111
      %v366 = vpop.permute.xlu0 %365
      %vm367 = vcmask 908288
      %v368 = vsel %vm367, %v362, %v364
      %v369 = vsel %vm367, %v364, %v366
      %372 = vrot.lane.b32.xlu0 %v322, 110
      %v373 = vpop.permute.xlu0 %372
      %374 = vrot.lane.b32.xlu0 %v323, 110
      %v375 = vpop.permute.xlu0 %374
      %376 = vrot.lane.b32.xlu0 %v324, 110
      %v377 = vpop.permute.xlu0 %376
      %vm378 = vcmask 900096
      %v379 = vsel %vm378, %v373, %v375
      %v380 = vsel %vm378, %v375, %v377
      %383 = vrot.lane.b32.xlu0 %v322, 96
      %v384 = vpop.permute.xlu0 %383
      %385 = vrot.lane.b32.xlu0 %v323, 96
      %v386 = vpop.permute.xlu0 %385
      %387 = vrot.lane.b32.xlu0 %v324, 96
      %v388 = vpop.permute.xlu0 %387
      %vm389 = vcmask 785408
      %v390 = vsel %vm389, %v384, %v386
      %v391 = vsel %vm389, %v386, %v388
      %394 = vrot.lane.b32.xlu0 %v322, 95
      %v395 = vpop.permute.xlu0 %394
      %396 = vrot.lane.b32.xlu0 %v323, 95
      %v397 = vpop.permute.xlu0 %396
      %398 = vrot.lane.b32.xlu0 %v324, 95
      %v399 = vpop.permute.xlu0 %398
      %vm400 = vcmask 777216
      %v401 = vsel %vm400, %v395, %v397
      %v402 = vsel %vm400, %v397, %v399
      %405 = vrot.lane.b32.xlu0 %v322, 94
      %v406 = vpop.permute.xlu0 %405
      %407 = vrot.lane.b32.xlu0 %v323, 94
      %v408 = vpop.permute.xlu0 %407
      %409 = vrot.lane.b32.xlu0 %v324, 94
      %v410 = vpop.permute.xlu0 %409
      %vm411 = vcmask 769024
      %v412 = vsel %vm411, %v406, %v408
      %v413 = vsel %vm411, %v408, %v410
      %v416 = vpack.c.bf16 %v335, %v322
      %v417 = vpack.c.bf16 %v336, %v323
      %v418 = vpack.c.bf16 %v357, %v346
      %v419 = vpack.c.bf16 %v358, %v347
      %v420 = vpack.c.bf16 %v379, %v368
      %v421 = vpack.c.bf16 %v380, %v369
      %v422 = vpack.c.bf16 %v401, %v390
      %v423 = vpack.c.bf16 %v402, %v391
      %v424 = vpack.c.bf16 %v412, %v412
      %v425 = vpack.c.bf16 %v413, %v413
      %v426 = vld [vmem:[%s3] sm:$0xf]
      %vm427 = vcmask 588800
      %v429 = vsel %vm427, %v426, 0
      %vm431 = vcmask 1043456
      %v433 = vsel %vm431, %v424, 0
      %v436 = vsel %vm431, %v425, 0
      %438 = vmatprep.subr.bf16.mxu0 %v417
      %439 = vmatpush1.bf16.msra.mxu0 %v416
      %440 = vmatprep.subr.bf16.mxu0 %v419
      %441 = vmatpush1.bf16.msra.mxu0 %v418
      %442 = vmatprep.subr.bf16.mxu0 %v421
      %443 = vmatpush1.bf16.msra.mxu0 %v420
      %444 = vmatprep.subr.bf16.mxu0 %v423
      %445 = vmatpush1.bf16.msra.mxu0 %v422
      %446 = vmatprep.subr.bf16.mxu0 %v436
      %447 = vmatpush1.bf16.msra.mxu0 %v433
      %448 = vmatprep.subr.bf16.mxu0 0
      %449 = vmatpush1.bf16.msra.mxu0 0
      %450 = vmatprep.subr.bf16.mxu0 0
      %451 = vmatpush1.bf16.msra.mxu0 0
      %452 = vmatprep.subr.bf16.mxu0 0
      %453 = vmatpush1.bf16.msra.mxu0 0
      %454 = vmatprep.subr.bf16.mxu0 0
      %455 = vmatpush1.bf16.msra.mxu0 0
      %456 = vmatprep.subr.bf16.mxu0 0
      %457 = vmatpush1.bf16.msra.mxu0 0
      %458 = vmatprep.subr.bf16.mxu0 0
      %459 = vmatpush1.bf16.msra.mxu0 0
      %460 = vmatprep.subr.bf16.mxu0 0
      %461 = vmatpush1.bf16.msra.mxu0 0
      %462 = vmatprep.subr.bf16.mxu0 0
      %463 = vmatpush1.bf16.msra.mxu0 0
      %464 = vmatprep.subr.bf16.mxu0 0
      %465 = vmatpush1.bf16.msra.mxu0 0
      %466 = vmatprep.subr.bf16.mxu0 0
      %467 = vmatpush1.bf16.msra.mxu0 0
      %468 = vmatprep.subr.bf16.mxu0 0
      %469 = vmatpush1.bf16.msra.mxu0 0
      %470 = vmatprep.mubr.bf16.mxu0 0
      %471 = vmatmul.mubr.bf16.gmra.mrb[0].mxu0 %v429
      %v472 = vpop.f32.mrb[0].mxu0
      %v473 = vadd.f32 0.0, %v472
      %v474 = vpop.f32.mrb[0].mxu0
      %v475 = vadd.f32 0.0, %v474
      %v476 = vpop.f32.mrb[0].mxu0
      %v477 = vpop.f32.mrb[0].mxu0
      %478 = vdwg.mxu0
      %479 = vst [vmem:[%s291] sm:$0xff] %v473
      %480 = vst [vmem:[%s291 + $0x8] sm:$0xff] %v475
      %v481 = vld [vmem:[%s4] sm:$0x3]
      %v483 = vlaneseq
      %v484 = vshrl.u32 %v483, 7
      %v485 = vsub.s32 0, %v484
      %v486 = vrot.slane %v481, %v485
      %v487 = vlaneseq
      %v488 = vshrl.u32 %v487, 7
      %v489 = vsub.s32 1, %v488
      %v490 = vrot.slane %v481, %v489
      %v493 = vmul.f32 %v473, %v486
      %v494 = vmul.f32 %v475, %v490
      %v495 = vadd.f32 %v493, %v494
      %496 = vadd.xlane.f32.xlu0 %v495
      %v497 = vpop.xlane.xlu0 %496
      %vm498 = vcmask 7168
      %499 = vst.msk [vmem:[%s295] sm:$0xff] %vm498, %v497
      %v500 = vmul.f32 %v473, %v473
      %v501 = vmul.f32 %v475, %v475
      %v502 = vmul.f32 %v500, %v486
      %v503 = vmul.f32 %v501, %v490
      %v504 = vadd.f32 %v502, %v503
      %505 = vadd.xlane.f32.xlu0 %v504
      %v506 = vpop.xlane.xlu0 %505
      %507 = vst.msk [vmem:[%s299] sm:$0xff] %vm498, %v506
      %p508 = scmp.lt.s32.totalorder %s19, 1
      %s509 = scalar_select %p508, %s19, 1
      %s510 = smul.addr %s509, 2
      %s511 = smul.addr %s510, 8
      %s512 = scalar_lea.vmem %s5, %s511
      %p513 = scmp.lt.s32.totalorder %s19, 1
      %s514 = scalar_select %p513, %s19, 1
      %s515 = smul.addr %s514, 8
      %s516 = scalar_lea.vmem %s6, %s515
      %p517 = scmp.lt.s32.totalorder %s19, 1
      %s518 = scalar_select %p517, %s19, 1
      %s519 = smul.addr %s518, 8
      %s520 = scalar_lea.vmem %s7, %s519
      // Predicated region
      $region41: #{up_forward.6} parent=39 // pred_check
        %p521 = pneg %p147
      $region42: #{up_forward.6} parent=39 // pred_check_branch
        %523 = sbr.rel (%p521) target = $region44
      $region43: #{up_forward.6} parent=39 // pred_region
        _
      $region44: #{up_forward.6} parent=39 // pred_fallthru
        _
      // Predicated region
      $region45: #{up_forward.6} parent=39 // pred_check
        %p524 = pneg %p173
      $region46: #{up_forward.6} parent=39 // pred_check_branch
        %526 = sbr.rel (%p524) target = $region48
      $region47: #{up_forward.6} parent=39 // pred_region
        _
      $region48: #{up_forward.6} parent=39 // pred_fallthru
        _
      // Predicated region
      $region49: #{up_forward.6} parent=39 // pred_check
        %p527 = pneg %p199
      $region50: #{up_forward.6} parent=39 // pred_check_branch
        %529 = sbr.rel (%p527) target = $region52
      $region51: #{up_forward.6} parent=39 // pred_region
        _
      $region52: #{up_forward.6} parent=39 // pred_fallthru
        _
    $region40: #{up_forward.6} parent=5 // pred_fallthru
      _
    %p530 = scmp.le.s32.totalorder 2, %s14
    // Predicated region
    $region53: #{up_forward.6} parent=5 // pred_check
      %p531 = pneg %p530
    $region54: #{up_forward.6} parent=5 // pred_check_branch
      %533 = sbr.rel (%p531) target = $region56
    $region55: #{up_forward.6} parent=5 // pred_region
      %s534 = ssub.s32 %s14, 2
      // Predicated region
      $region57: #{up_forward.6} parent=55 // pred_check
        %p535 = pneg %p153
      $region58: #{up_forward.6} parent=55 // pred_check_branch
        %537 = sbr.rel (%p535) target = $region60
      $region59: #{up_forward.6} parent=55 // pred_region
        %p538 = scmp.lt.s32.totalorder %s20, 1
        %s539 = scalar_select %p538, %s20, 1
        %s540 = smul.addr %s539, 2
        %s541 = smul.addr %s540, 8
        %s542 = scalar_lea.vmem %s5, %s541
      $region60: #{up_forward.6} parent=55 // pred_fallthru
        _
      // Predicated region
      $region61: #{up_forward.6} parent=55 // pred_check
        %p543 = pneg %p179
      $region62: #{up_forward.6} parent=55 // pred_check_branch
        %545 = sbr.rel (%p543) target = $region64
      $region63: #{up_forward.6} parent=55 // pred_region
        %p546 = scmp.lt.s32.totalorder %s20, 1
        %s547 = scalar_select %p546, %s20, 1
        %s548 = smul.addr %s547, 8
        %s549 = scalar_lea.vmem %s6, %s548
      $region64: #{up_forward.6} parent=55 // pred_fallthru
        _
      // Predicated region
      $region65: #{up_forward.6} parent=55 // pred_check
        %p550 = pneg %p205
      $region66: #{up_forward.6} parent=55 // pred_check_branch
        %552 = sbr.rel (%p550) target = $region68
      $region67: #{up_forward.6} parent=55 // pred_region
        %p553 = scmp.lt.s32.totalorder %s20, 1
        %s554 = scalar_select %p553, %s20, 1
        %s555 = smul.addr %s554, 8
        %s556 = scalar_lea.vmem %s7, %s555
      $region68: #{up_forward.6} parent=55 // pred_fallthru
        _
    $region56: #{up_forward.6} parent=5 // pred_fallthru
      _
  $region6: #{up_forward.6} parent=0 // loop_footer
    %s18 = sadd.s32 1, %s14
  $region7: #{up_forward.6} parent=0 // loop_footer_branch
    %13 = sbr.rel target = $region3
  $region8: #{up_forward.6} parent=0 // loop_exit
    _

// kernel: up_forward.4
$region0: #{up_forward.4}
  #allocation0 [shape = 'u32[]', space=smem, size = 0x4, offset = 0x4, fixed_abs, tag = 'smem constant byte address 0x4 - core index']
  #allocation1 [shape = 'u32[144,128]{1,0:T(1,128)}', space=vmem, size = 0x12000, scoped, tag = 'internal scratch']
  %s0 = inlined_call_operand.vmem [shape: f32[16,8], index: 0, kind: input, shape index: {}]
  %s1 = inlined_call_operand.vmem [shape: f32[8,16], index: 1, kind: input, shape index: {}]
  %s2 = inlined_call_operand.vmem [shape: f32[2,4,8,8], index: 2, kind: input, shape index: {}]
  %s3 = inlined_call_operand.vmem [shape: f32[2,4,16,16], index: 3, kind: output, shape index: {}]
  %s4 = sld [smem:[#allocation0]]
  $region45: #{up_forward.4} parent=0
    _
  %s6 = ssub.s32 1, %s4
  %s7 = scalar_select 0, %s6, %s4
  loop: start=0, step=1, limit=4
  $region2: #{up_forward.4} parent=0 // loop_pre_header
    _
  $region3: #{up_forward.4} parent=0 // loop_header
    %s9 = sphi 0, %s13
    %p10 = scmp.ge.s32.totalorder %s9, 4
    %s17 = sphi 0, %s17
    %s19 = sphi 0, %s17
    %s20 = sphi 0, %s19
    %s34 = sphi 0, %s20
    %s38 = sphi 0, %s38
    %s40 = sphi 0, %s38
    %s41 = sphi 0, %s40
    %s55 = sphi 0, %s41
    %s61 = sphi 0, %s63
    %s64 = sphi 0, %s61
    %s65 = sphi 0, %s64
    %s81 = sphi 0, %s65
    %s87 = sphi 0, %s89
    %s90 = sphi 0, %s87
    %s91 = sphi 0, %s90
    %s107 = sphi 0, %s91
  $region4: #{up_forward.4} parent=0 // loop_header_branch
    %12 = sbr.rel (%p10) target = $region8
  $region5: #{up_forward.4} parent=0 // loop_body
    %s14 = ssub.s32 %s9, 1
    %s15 = ssub.s32 %s9, 2
    %s16 = sadd.s32 %s9, 1
    %s18 = sadd.s32 %s17, 1
    %p21 = scmp.eq.s32.totalorder %s9, 1
    %p22 = scmp.ne.s32.totalorder %s17, %s19
    %p23 = scmp.eq.s32.totalorder %s9, 0
    %p24 = por %p22, %p23
    %p25 = scmp.ne.s32.totalorder %s17, %s19
    %p26 = scmp.eq.s32.totalorder %s14, 1
    %p27 = por %p25, %p26
    %p28 = scmp.ne.s32.totalorder %s19, %s20
    %p29 = scmp.eq.s32.totalorder %s14, 0
    %p30 = por %p28, %p29
    %p31 = scmp.ne.s32.totalorder %s19, %s20
    %p32 = scmp.eq.s32.totalorder %s15, 1
    %p33 = por %p31, %p32
    %p35 = scmp.ne.s32.totalorder %s20, %s34
    %p36 = scmp.eq.s32.totalorder %s15, 0
    %p37 = por %p35, %p36
    %s39 = sadd.s32 %s38, 1
    %p42 = scmp.eq.s32.totalorder %s9, 1
    %p43 = scmp.ne.s32.totalorder %s38, %s40
    %p44 = scmp.eq.s32.totalorder %s9, 0
    %p45 = por %p43, %p44
    %p46 = scmp.ne.s32.totalorder %s38, %s40
    %p47 = scmp.eq.s32.totalorder %s14, 1
    %p48 = por %p46, %p47
    %p49 = scmp.ne.s32.totalorder %s40, %s41
    %p50 = scmp.eq.s32.totalorder %s14, 0
    %p51 = por %p49, %p50
    %p52 = scmp.ne.s32.totalorder %s40, %s41
    %p53 = scmp.eq.s32.totalorder %s15, 1
    %p54 = por %p52, %p53
    %p56 = scmp.ne.s32.totalorder %s41, %s55
    %p57 = scmp.eq.s32.totalorder %s15, 0
    %p58 = por %p56, %p57
    %s59 = ssub.s32 %s9, %s16
    %p60 = scmp.eq.s32.totalorder %s59, 0
    %s62 = sadd.s32 %s61, 1
    %s63 = scalar_select %p60, %s61, %s62
    %p66 = pneg %p60
    %p67 = scmp.eq.s32.totalorder %s9, 1
    %p68 = por %p66, %p67
    %p69 = scmp.ne.s32.totalorder %s61, %s64
    %p70 = scmp.eq.s32.totalorder %s9, 0
    %p71 = por %p69, %p70
    %p72 = scmp.ne.s32.totalorder %s61, %s64
    %p73 = scmp.eq.s32.totalorder %s14, 1
    %p74 = por %p72, %p73
    %p75 = scmp.ne.s32.totalorder %s64, %s65
    %p76 = scmp.eq.s32.totalorder %s14, 0
    %p77 = por %p75, %p76
    %p78 = scmp.ne.s32.totalorder %s64, %s65
    %p79 = scmp.eq.s32.totalorder %s15, 1
    %p80 = por %p78, %p79
    %p82 = scmp.ne.s32.totalorder %s65, %s81
    %p83 = scmp.eq.s32.totalorder %s15, 0
    %p84 = por %p82, %p83
    %s85 = ssub.s32 %s9, %s16
    %p86 = scmp.eq.s32.totalorder %s85, 0
    %s88 = sadd.s32 %s87, 1
    %s89 = scalar_select %p86, %s87, %s88
    %p92 = pneg %p86
    %p93 = scmp.eq.s32.totalorder %s9, 1
    %p94 = por %p92, %p93
    %p95 = scmp.ne.s32.totalorder %s87, %s90
    %p96 = scmp.eq.s32.totalorder %s9, 0
    %p97 = por %p95, %p96
    %p98 = scmp.ne.s32.totalorder %s87, %s90
    %p99 = scmp.eq.s32.totalorder %s14, 1
    %p100 = por %p98, %p99
    %p101 = scmp.ne.s32.totalorder %s90, %s91
    %p102 = scmp.eq.s32.totalorder %s14, 0
    %p103 = por %p101, %p102
    %p104 = scmp.ne.s32.totalorder %s90, %s91
    %p105 = scmp.eq.s32.totalorder %s15, 1
    %p106 = por %p104, %p105
    %p108 = scmp.ne.s32.totalorder %s91, %s107
    %p109 = scmp.eq.s32.totalorder %s15, 0
    %p110 = por %p108, %p109
    %p111 = scmp.le.s32.totalorder 1, %s9
    %p112 = scmp.lt.s32.totalorder %s9, 3
    %p113 = pnand %p111, %p112
    %p114 = pneg %p113
    // Predicated region
    $region9: #{up_forward.4} parent=5 // pred_check
      _
    $region10: #{up_forward.4} parent=5 // pred_check_branch
      %116 = sbr.rel (%p113) target = $region12
    $region11: #{up_forward.4} parent=5 // pred_region
      %s117 = ssub.s32 %s9, 1
      // Predicated region
      $region13: #{up_forward.4} parent=11 // pred_check
        %p118 = pneg %p30
      $region14: #{up_forward.4} parent=11 // pred_check_branch
        %120 = sbr.rel (%p118) target = $region16
      $region15: #{up_forward.4} parent=11 // pred_region
        _
      $region16: #{up_forward.4} parent=11 // pred_fallthru
        _
      // Predicated region
      $region17: #{up_forward.4} parent=11 // pred_check
        %p121 = pneg %p51
      $region18: #{up_forward.4} parent=11 // pred_check_branch
        %123 = sbr.rel (%p121) target = $region20
      $region19: #{up_forward.4} parent=11 // pred_region
        _
      $region20: #{up_forward.4} parent=11 // pred_fallthru
        _
    $region12: #{up_forward.4} parent=5 // pred_fallthru
      _
    %p124 = scmp.lt.s32.totalorder %s9, 2
    // Predicated region
    $region21: #{up_forward.4} parent=5 // pred_check
      %p125 = pneg %p124
    $region22: #{up_forward.4} parent=5 // pred_check_branch
      %127 = sbr.rel (%p125) target = $region24
    $region23: #{up_forward.4} parent=5 // pred_region
      // Predicated region
      $region25: #{up_forward.4} parent=23 // pred_check
        %p128 = pneg %p71
      $region26: #{up_forward.4} parent=23 // pred_check_branch
        %130 = sbr.rel (%p128) target = $region28
      $region27: #{up_forward.4} parent=23 // pred_region
        %p131 = scmp.lt.s32.totalorder %s9, 1
        %s132 = scalar_select %p131, %s9, 1
        %s133 = smul.addr %s132, 4
        %s134 = smul.addr %s133, 8
        %s135 = scalar_lea.vmem %s2, %s134
      $region28: #{up_forward.4} parent=23 // pred_fallthru
        _
    $region24: #{up_forward.4} parent=5 // pred_fallthru
      _
    %p136 = scmp.le.s32.totalorder 1, %s9
    %p137 = scmp.lt.s32.totalorder %s9, 3
    %p138 = pnand %p136, %p137
    %p139 = pneg %p138
    // Predicated region
    $region29: #{up_forward.4} parent=5 // pred_check
      _
    $region30: #{up_forward.4} parent=5 // pred_check_branch
      %141 = sbr.rel (%p138) target = $region32
    $region31: #{up_forward.4} parent=5 // pred_region
      %s142 = ssub.s32 %s9, 1
      %p143 = pneg %p30
      %p144 = pneg %p27
      %p145 = pneg %p51
      %p146 = pneg %p48
      %p147 = scmp.lt.s32.totalorder %s14, 1
      %s148 = scalar_select %p147, %s14, 1
      %s149 = smul.addr %s148, 4
      %s150 = smul.addr %s149, 8
      %s151 = scalar_lea.vmem %s2, %s150
      %p152 = pneg %p77
      %p153 = pneg %p74
      %p154 = pneg %p103
      %p155 = pneg %p100
      %p156 = scmp.lt.s32.totalorder %s14, 1
      %s157 = scalar_select %p156, %s14, 1
      %s158 = smul.addr %s157, 8
      %s159 = smul.addr %s158, 8
      %s160 = scalar_lea.vmem %s3, %s159
      %p161 = scmp.lt.s32.totalorder %s14, 1
      %s162 = scalar_select %p161, %s14, 1
      %s163 = smul.addr %s162, 4
      %s164 = smul.addr %s163, 8
      %s165 = scalar_lea.vmem %s2, %s164
      %p166 = scmp.lt.s32.totalorder %s14, 1
      %s167 = scalar_select %p166, %s14, 1
      %s168 = smul.addr %s167, 8
      %s169 = smul.addr %s168, 8
      %s170 = scalar_lea.vmem %s3, %s169
      %v171 = vld [vmem:[%s0] sm:$0xff]
      %v172 = vld [vmem:[%s0 + $0x8] sm:$0xff]
      %v173 = vld [vmem:[%s1] sm:$0xff]
      %v174 = vld [vmem:[%s165] sm:$0xff]
      %v175 = vld [vmem:[%s165 + $0x8] sm:$0xff]
      %v176 = vld [vmem:[%s165 + $0x10] sm:$0xff]
      %v177 = vld [vmem:[%s165 + $0x18] sm:$0xff]
      %vm178 = vcmask 64512
      %v180 = vsel %vm178, %v171, 0
      %v183 = vsel %vm178, %v172, 0
      %185 = vmatprep.subr.mxu0 0.0
      %186 = vmatpush1.msra.mxu0 %v174
      %187 = vmatprep.subr.mxu0 0.0
      %188 = vmatpush1.msra.mxu0 0.0
      %189 = vmatprep.subr.mxu0 0.0
      %190 = vmatpush1.msra.mxu0 0.0
      %191 = vmatprep.subr.mxu0 0.0
      %192 = vmatpush1.msra.mxu0 0.0
      %193 = vmatprep.subr.mxu0 0.0
      %194 = vmatpush1.msra.mxu0 0.0
      %195 = vmatprep.subr.mxu0 0.0
      %196 = vmatpush1.msra.mxu0 0.0
      %197 = vmatprep.subr.mxu0 0.0
      %198 = vmatpush1.msra.mxu0 0.0
      %199 = vmatprep.subr.mxu0 0.0
      %200 = vmatpush1.msra.mxu0 0.0
      %201 = vmatprep.subr.mxu0 0.0
      %202 = vmatpush1.msra.mxu0 0.0
      %203 = vmatprep.subr.mxu0 0.0
      %204 = vmatpush1.msra.mxu0 0.0
      %205 = vmatprep.subr.mxu0 0.0
      %206 = vmatpush1.msra.mxu0 0.0
      %207 = vmatprep.subr.mxu0 0.0
      %208 = vmatpush1.msra.mxu0 0.0
      %209 = vmatprep.subr.mxu0 0.0
      %210 = vmatpush1.msra.mxu0 0.0
      %211 = vmatprep.subr.mxu0 0.0
      %212 = vmatpush1.msra.mxu0 0.0
      %213 = vmatprep.subr.mxu0 0.0
      %214 = vmatpush1.msra.mxu0 0.0
      %215 = vmatprep.subr.mxu0 0.0
      %216 = vmatpush1.msra.mxu0 0.0
      %217 = vmatprep.subr.mxu0 0.0
      %218 = vmatpush1.msra.mxu0 0.0
      %219 = vmatprep.subr.mxu0 0.0
      %220 = vmatpush1.msra.mxu0 0.0
      %221 = vmatprep.subr.mxu0 0.0
      %222 = vmatpush1.msra.mxu0 0.0
      %223 = vmatprep.subr.mxu0 0.0
      %224 = vmatpush1.msra.mxu0 0.0
      %225 = vmatprep.subr.mxu0 0.0
      %226 = vmatpush1.msra.mxu0 0.0
      %227 = vmatprep.subr.mxu0 0.0
      %228 = vmatpush1.msra.mxu0 0.0
      %229 = vmatprep.subr.mxu0 0.0
      %230 = vmatpush1.msra.mxu0 0.0
      %231 = vmatprep.subr.mxu0 0.0
      %232 = vmatpush1.msra.mxu0 0.0
      %233 = vmatprep.subr.mxu0 0.0
      %234 = vmatpush1.msra.mxu0 0.0
      %235 = vmatprep.subr.mxu0 0.0
      %236 = vmatpush1.msra.mxu0 0.0
      %237 = vmatprep.subr.mxu0 0.0
      %238 = vmatpush1.msra.mxu0 0.0
      %239 = vmatprep.subr.mxu0 0.0
      %240 = vmatpush1.msra.mxu0 0.0
      %241 = vmatprep.subr.mxu0 0.0
      %242 = vmatpush1.msra.mxu0 0.0
      %243 = vmatprep.subr.mxu0 0.0
      %244 = vmatpush1.msra.mxu0 0.0
      %245 = vmatprep.subr.mxu0 0.0
      %246 = vmatpush1.msra.mxu0 0.0
      %247 = vmatprep.subr.mxu0 0.0
      %248 = vmatpush1.msra.mxu0 0.0
      %249 = vmatprep.mubr.f32.mxu0 0.0
      %250 = vmatmul.mubr.f32.gmra.mrb[0].mxu0 %v180
      %v251 = vpop.f32.mrb[0].mxu0
      %v252 = vadd.f32 0.0, %v251
      %v253 = vpop.f32.mrb[0].mxu0
      %254 = vmatprep.mubr.f32.mxu0 0.0
      %255 = vmatmul.mubr.f32.gmra.mrb[0].mxu0 %v183
      %v256 = vpop.f32.mrb[0].mxu0
      %v257 = vadd.f32 0.0, %v256
      %v258 = vpop.f32.mrb[0].mxu0
      %259 = vdwg.mxu0
      %v261 = vsel %vm178, %v252, 0
      %v264 = vsel %vm178, %v257, 0
      %266 = vmatprep.subr.mxu0 0.0
      %267 = vmatpush1.msra.mxu0 %v173
      %268 = vmatprep.subr.mxu0 0.0
      %269 = vmatpush1.msra.mxu0 0.0
      %270 = vmatprep.subr.mxu0 0.0
      %271 = vmatpush1.msra.mxu0 0.0
      %272 = vmatprep.subr.mxu0 0.0
      %273 = vmatpush1.msra.mxu0 0.0
      %274 = vmatprep.subr.mxu0 0.0
      %275 = vmatpush1.msra.mxu0 0.0
      %276 = vmatprep.subr.mxu0 0.0
      %277 = vmatpush1.msra.mxu0 0.0
      %278 = vmatprep.subr.mxu0 0.0
      %279 = vmatpush1.msra.mxu0 0.0
      %280 = vmatprep.subr.mxu0 0.0
      %281 = vmatpush1.msra.mxu0 0.0
      %282 = vmatprep.subr.mxu0 0.0
      %283 = vmatpush1.msra.mxu0 0.0
      %284 = vmatprep.subr.mxu0 0.0
      %285 = vmatpush1.msra.mxu0 0.0
      %286 = vmatprep.subr.mxu0 0.0
      %287 = vmatpush1.msra.mxu0 0.0
      %288 = vmatprep.subr.mxu0 0.0
      %289 = vmatpush1.msra.mxu0 0.0
      %290 = vmatprep.subr.mxu0 0.0
      %291 = vmatpush1.msra.mxu0 0.0
      %292 = vmatprep.subr.mxu0 0.0
      %293 = vmatpush1.msra.mxu0 0.0
      %294 = vmatprep.subr.mxu0 0.0
      %295 = vmatpush1.msra.mxu0 0.0
      %296 = vmatprep.subr.mxu0 0.0
      %297 = vmatpush1.msra.mxu0 0.0
      %298 = vmatprep.subr.mxu0 0.0
      %299 = vmatpush1.msra.mxu0 0.0
      %300 = vmatprep.subr.mxu0 0.0
      %301 = vmatpush1.msra.mxu0 0.0
      %302 = vmatprep.subr.mxu0 0.0
      %303 = vmatpush1.msra.mxu0 0.0
      %304 = vmatprep.subr.mxu0 0.0
      %305 = vmatpush1.msra.mxu0 0.0
      %306 = vmatprep.subr.mxu0 0.0
      %307 = vmatpush1.msra.mxu0 0.0
      %308 = vmatprep.subr.mxu0 0.0
      %309 = vmatpush1.msra.mxu0 0.0
      %310 = vmatprep.subr.mxu0 0.0
      %311 = vmatpush1.msra.mxu0 0.0
      %312 = vmatprep.subr.mxu0 0.0
      %313 = vmatpush1.msra.mxu0 0.0
      %314 = vmatprep.subr.mxu0 0.0
      %315 = vmatpush1.msra.mxu0 0.0
      %316 = vmatprep.subr.mxu0 0.0
      %317 = vmatpush1.msra.mxu0 0.0
      %318 = vmatprep.subr.mxu0 0.0
      %319 = vmatpush1.msra.mxu0 0.0
      %320 = vmatprep.subr.mxu0 0.0
      %321 = vmatpush1.msra.mxu0 0.0
      %322 = vmatprep.subr.mxu0 0.0
      %323 = vmatpush1.msra.mxu0 0.0
      %324 = vmatprep.subr.mxu0 0.0
      %325 = vmatpush1.msra.mxu0 0.0
      %326 = vmatprep.subr.mxu0 0.0
      %327 = vmatpush1.msra.mxu0 0.0
      %328 = vmatprep.subr.mxu0 0.0
      %329 = vmatpush1.msra.mxu0 0.0
      %330 = vmatprep.mubr.f32.mxu0 0.0
      %331 = vmatmul.mubr.f32.gmra.mrb[0].mxu0 %v261
      %v332 = vpop.f32.mrb[0].mxu0
      %v333 = vadd.f32 0.0, %v332
      %v334 = vpop.f32.mrb[0].mxu0
      %335 = vmatprep.mubr.f32.mxu0 0.0
      %336 = vmatmul.mubr.f32.gmra.mrb[0].mxu0 %v264
      %v337 = vpop.f32.mrb[0].mxu0
      %v338 = vadd.f32 0.0, %v337
      %v339 = vpop.f32.mrb[0].mxu0
      %340 = vdwg.mxu0
      %vm341 = vcmask 130048
      %342 = vst.msk [vmem:[%s170] sm:$0xff] %vm341, %v333
      %343 = vst.msk [vmem:[%s170 + $0x8] sm:$0xff] %vm341, %v338
      %344 = vmatprep.subr.mxu0 0.0
      %345 = vmatpush1.msra.mxu0 %v175
      %346 = vmatprep.subr.mxu0 0.0
      %347 = vmatpush1.msra.mxu0 0.0
      %348 = vmatprep.subr.mxu0 0.0
      %349 = vmatpush1.msra.mxu0 0.0
      %350 = vmatprep.subr.mxu0 0.0
      %351 = vmatpush1.msra.mxu0 0.0
      %352 = vmatprep.subr.mxu0 0.0
      %353 = vmatpush1.msra.mxu0 0.0
      %354 = vmatprep.subr.mxu0 0.0
      %355 = vmatpush1.msra.mxu0 0.0
      %356 = vmatprep.subr.mxu0 0.0
      %357 = vmatpush1.msra.mxu0 0.0
      %358 = vmatprep.subr.mxu0 0.0
      %359 = vmatpush1.msra.mxu0 0.0
      %360 = vmatprep.subr.mxu0 0.0
      %361 = vmatpush1.msra.mxu0 0.0
      %362 = vmatprep.subr.mxu0 0.0
      %363 = vmatpush1.msra.mxu0 0.0
      %364 = vmatprep.subr.mxu0 0.0
      %365 = vmatpush1.msra.mxu0 0.0
      %366 = vmatprep.subr.mxu0 0.0
      %367 = vmatpush1.msra.mxu0 0.0
      %368 = vmatprep.subr.mxu0 0.0
      %369 = vmatpush1.msra.mxu0 0.0
      %370 = vmatprep.subr.mxu0 0.0
      %371 = vmatpush1.msra.mxu0 0.0
      %372 = vmatprep.subr.mxu0 0.0
      %373 = vmatpush1.msra.mxu0 0.0
      %374 = vmatprep.subr.mxu0 0.0
      %375 = vmatpush1.msra.mxu0 0.0
      %376 = vmatprep.subr.mxu0 0.0
      %377 = vmatpush1.msra.mxu0 0.0
      %378 = vmatprep.subr.mxu0 0.0
      %379 = vmatpush1.msra.mxu0 0.0
      %380 = vmatprep.subr.mxu0 0.0
      %381 = vmatpush1.msra.mxu0 0.0
      %382 = vmatprep.subr.mxu0 0.0
      %383 = vmatpush1.msra.mxu0 0.0
      %384 = vmatprep.subr.mxu0 0.0
      %385 = vmatpush1.msra.mxu0 0.0
      %386 = vmatprep.subr.mxu0 0.0
      %387 = vmatpush1.msra.mxu0 0.0
      %388 = vmatprep.subr.mxu0 0.0
      %389 = vmatpush1.msra.mxu0 0.0
      %390 = vmatprep.subr.mxu0 0.0
      %391 = vmatpush1.msra.mxu0 0.0
      %392 = vmatprep.subr.mxu0 0.0
      %393 = vmatpush1.msra.mxu0 0.0
      %394 = vmatprep.subr.mxu0 0.0
      %395 = vmatpush1.msra.mxu0 0.0
      %396 = vmatprep.subr.mxu0 0.0
      %397 = vmatpush1.msra.mxu0 0.0
      %398 = vmatprep.subr.mxu0 0.0
      %399 = vmatpush1.msra.mxu0 0.0
      %400 = vmatprep.subr.mxu0 0.0
      %401 = vmatpush1.msra.mxu0 0.0
      %402 = vmatprep.subr.mxu0 0.0
      %403 = vmatpush1.msra.mxu0 0.0
      %404 = vmatprep.subr.mxu0 0.0
      %405 = vmatpush1.msra.mxu0 0.0
      %406 = vmatprep.subr.mxu0 0.0
      %407 = vmatpush1.msra.mxu0 0.0
      %408 = vmatprep.mubr.f32.mxu0 0.0
      %409 = vmatmul.mubr.f32.gmra.mrb[0].mxu0 %v180
      %v410 = vpop.f32.mrb[0].mxu0
      %v411 = vadd.f32 0.0, %v410
      %v412 = vpop.f32.mrb[0].mxu0
      %413 = vmatprep.mubr.f32.mxu0 0.0
      %414 = vmatmul.mubr.f32.gmra.mrb[0].mxu0 %v183
      %v415 = vpop.f32.mrb[0].mxu0
      %v416 = vadd.f32 0.0, %v415
      %v417 = vpop.f32.mrb[0].mxu0
      %418 = vdwg.mxu0
      %v420 = vsel %vm178, %v411, 0
      %v423 = vsel %vm178, %v416, 0
      %425 = vmatprep.subr.mxu0 0.0
      %426 = vmatpush1.msra.mxu0 %v173
      %427 = vmatprep.subr.mxu0 0.0
      %428 = vmatpush1.msra.mxu0 0.0
      %429 = vmatprep.subr.mxu0 0.0
      %430 = vmatpush1.msra.mxu0 0.0
      %431 = vmatprep.subr.mxu0 0.0
      %432 = vmatpush1.msra.mxu0 0.0
      %433 = vmatprep.subr.mxu0 0.0
      %434 = vmatpush1.msra.mxu0 0.0
      %435 = vmatprep.subr.mxu0 0.0
      %436 = vmatpush1.msra.mxu0 0.0
      %437 = vmatprep.subr.mxu0 0.0
      %438 = vmatpush1.msra.mxu0 0.0
      %439 = vmatprep.subr.mxu0 0.0
      %440 = vmatpush1.msra.mxu0 0.0
      %441 = vmatprep.subr.mxu0 0.0
      %442 = vmatpush1.msra.mxu0 0.0
      %443 = vmatprep.subr.mxu0 0.0
      %444 = vmatpush1.msra.mxu0 0.0
      %445 = vmatprep.subr.mxu0 0.0
      %446 = vmatpush1.msra.mxu0 0.0
      %447 = vmatprep.subr.mxu0 0.0
      %448 = vmatpush1.msra.mxu0 0.0
      %449 = vmatprep.subr.mxu0 0.0
      %450 = vmatpush1.msra.mxu0 0.0
      %451 = vmatprep.subr.mxu0 0.0
      %452 = vmatpush1.msra.mxu0 0.0
      %453 = vmatprep.subr.mxu0 0.0
      %454 = vmatpush1.msra.mxu0 0.0
      %455 = vmatprep.subr.mxu0 0.0
      %456 = vmatpush1.msra.mxu0 0.0
      %457 = vmatprep.subr.mxu0 0.0
      %458 = vmatpush1.msra.mxu0 0.0
      %459 = vmatprep.subr.mxu0 0.0
      %460 = vmatpush1.msra.mxu0 0.0
      %461 = vmatprep.subr.mxu0 0.0
      %462 = vmatpush1.msra.mxu0 0.0
      %463 = vmatprep.subr.mxu0 0.0
      %464 = vmatpush1.msra.mxu0 0.0
      %465 = vmatprep.subr.mxu0 0.0
      %466 = vmatpush1.msra.mxu0 0.0
      %467 = vmatprep.subr.mxu0 0.0
      %468 = vmatpush1.msra.mxu0 0.0
      %469 = vmatprep.subr.mxu0 0.0
      %470 = vmatpush1.msra.mxu0 0.0
      %471 = vmatprep.subr.mxu0 0.0
      %472 = vmatpush1.msra.mxu0 0.0
      %473 = vmatprep.subr.mxu0 0.0
      %474 = vmatpush1.msra.mxu0 0.0
      %475 = vmatprep.subr.mxu0 0.0
      %476 = vmatpush1.msra.mxu0 0.0
      %477 = vmatprep.subr.mxu0 0.0
      %478 = vmatpush1.msra.mxu0 0.0
      %479 = vmatprep.subr.mxu0 0.0
      %480 = vmatpush1.msra.mxu0 0.0
      %481 = vmatprep.subr.mxu0 0.0
      %482 = vmatpush1.msra.mxu0 0.0
      %483 = vmatprep.subr.mxu0 0.0
      %484 = vmatpush1.msra.mxu0 0.0
      %485 = vmatprep.subr.mxu0 0.0
      %486 = vmatpush1.msra.mxu0 0.0
      %487 = vmatprep.subr.mxu0 0.0
      %488 = vmatpush1.msra.mxu0 0.0
      %489 = vmatprep.mubr.f32.mxu0 0.0
      %490 = vmatmul.mubr.f32.gmra.mrb[0].mxu0 %v420
      %v491 = vpop.f32.mrb[0].mxu0
      %v492 = vadd.f32 0.0, %v491
      %v493 = vpop.f32.mrb[0].mxu0
      %494 = vmatprep.mubr.f32.mxu0 0.0
      %495 = vmatmul.mubr.f32.gmra.mrb[0].mxu0 %v423
      %v496 = vpop.f32.mrb[0].mxu0
      %v497 = vadd.f32 0.0, %v496
      %v498 = vpop.f32.mrb[0].mxu0
      %499 = vdwg.mxu0
      %s500 = scalar_lea.vmem %s170, 16
      %501 = vst.msk [vmem:[%s500] sm:$0xff] %vm341, %v492
      %502 = vst.msk [vmem:[%s500 + $0x8] sm:$0xff] %vm341, %v497
      %503 = vmatprep.subr.mxu0 0.0
      %504 = vmatpush1.msra.mxu0 %v176
      %505 = vmatprep.subr.mxu0 0.0
      %506 = vmatpush1.msra.mxu0 0.0
      %507 = vmatprep.subr.mxu0 0.0
      %508 = vmatpush1.msra.mxu0 0.0
      %509 = vmatprep.subr.mxu0 0.0
      %510 = vmatpush1.msra.mxu0 0.0
      %511 = vmatprep.subr.mxu0 0.0
      %512 = vmatpush1.msra.mxu0 0.0
      %513 = vmatprep.subr.mxu0 0.0
      %514 = vmatpush1.msra.mxu0 0.0
      %515 = vmatprep.subr.mxu0 0.0
      %516 = vmatpush1.msra.mxu0 0.0
      %517 = vmatprep.subr.mxu0 0.0
      %518 = vmatpush1.msra.mxu0 0.0
      %519 = vmatprep.subr.mxu0 0.0
      %520 = vmatpush1.msra.mxu0 0.0
      %521 = vmatprep.subr.mxu0 0.0
      %522 = vmatpush1.msra.mxu0 0.0
      %523 = vmatprep.subr.mxu0 0.0
      %524 = vmatpush1.msra.mxu0 0.0
      %525 = vmatprep.subr.mxu0 0.0
      %526 = vmatpush1.msra.mxu0 0.0
      %527 = vmatprep.subr.mxu0 0.0
      %528 = vmatpush1.msra.mxu0 0.0
      %529 = vmatprep.subr.mxu0 0.0
      %530 = vmatpush1.msra.mxu0 0.0
      %531 = vmatprep.subr.mxu0 0.0
      %532 = vmatpush1.msra.mxu0 0.0
      %533 = vmatprep.subr.mxu0 0.0
      %534 = vmatpush1.msra.mxu0 0.0
      %535 = vmatprep.subr.mxu0 0.0
      %536 = vmatpush1.msra.mxu0 0.0
      %537 = vmatprep.subr.mxu0 0.0
      %538 = vmatpush1.msra.mxu0 0.0
      %539 = vmatprep.subr.mxu0 0.0
      %540 = vmatpush1.msra.mxu0 0.0
      %541 = vmatprep.subr.mxu0 0.0
      %542 = vmatpush1.msra.mxu0 0.0
      %543 = vmatprep.subr.mxu0 0.0
      %544 = vmatpush1.msra.mxu0 0.0
      %545 = vmatprep.subr.mxu0 0.0
      %546 = vmatpush1.msra.mxu0 0.0
      %547 = vmatprep.subr.mxu0 0.0
      %548 = vmatpush1.msra.mxu0 0.0
      %549 = vmatprep.subr.mxu0 0.0
      %550 = vmatpush1.msra.mxu0 0.0
      %551 = vmatprep.subr.mxu0 0.0
      %552 = vmatpush1.msra.mxu0 0.0
      %553 = vmatprep.subr.mxu0 0.0
      %554 = vmatpush1.msra.mxu0 0.0
      %555 = vmatprep.subr.mxu0 0.0
      %556 = vmatpush1.msra.mxu0 0.0
      %557 = vmatprep.subr.mxu0 0.0
      %558 = vmatpush1.msra.mxu0 0.0
      %559 = vmatprep.subr.mxu0 0.0
      %560 = vmatpush1.msra.mxu0 0.0
      %561 = vmatprep.subr.mxu0 0.0
      %562 = vmatpush1.msra.mxu0 0.0
      %563 = vmatprep.subr.mxu0 0.0
      %564 = vmatpush1.msra.mxu0 0.0
      %565 = vmatprep.subr.mxu0 0.0
      %566 = vmatpush1.msra.mxu0 0.0
      %567 = vmatprep.mubr.f32.mxu0 0.0
      %568 = vmatmul.mubr.f32.gmra.mrb[0].mxu0 %v180
      %v569 = vpop.f32.mrb[0].mxu0
      %v570 = vadd.f32 0.0, %v569
      %v571 = vpop.f32.mrb[0].mxu0
      %572 = vmatprep.mubr.f32.mxu0 0.0
      %573 = vmatmul.mubr.f32.gmra.mrb[0].mxu0 %v183
      %v574 = vpop.f32.mrb[0].mxu0
      %v575 = vadd.f32 0.0, %v574
      %v576 = vpop.f32.mrb[0].mxu0
      %577 = vdwg.mxu0
      %v579 = vsel %vm178, %v570, 0
      %v582 = vsel %vm178, %v575, 0
      %584 = vmatprep.subr.mxu0 0.0
      %585 = vmatpush1.msra.mxu0 %v173
      %586 = vmatprep.subr.mxu0 0.0
      %587 = vmatpush1.msra.mxu0 0.0
      %588 = vmatprep.subr.mxu0 0.0
      %589 = vmatpush1.msra.mxu0 0.0
      %590 = vmatprep.subr.mxu0 0.0
      %591 = vmatpush1.msra.mxu0 0.0
      %592 = vmatprep.subr.mxu0 0.0
      %593 = vmatpush1.msra.mxu0 0.0
      %594 = vmatprep.subr.mxu0 0.0
      %595 = vmatpush1.msra.mxu0 0.0
      %596 = vmatprep.subr.mxu0 0.0
      %597 = vmatpush1.msra.mxu0 0.0
      %598 = vmatprep.subr.mxu0 0.0
      %599 = vmatpush1.msra.mxu0 0.0
      %600 = vmatprep.subr.mxu0 0.0
      %601 = vmatpush1.msra.mxu0 0.0
      %602 = vmatprep.subr.mxu0 0.0
      %603 = vmatpush1.msra.mxu0 0.0
      %604 = vmatprep.subr.mxu0 0.0
      %605 = vmatpush1.msra.mxu0 0.0
      %606 = vmatprep.subr.mxu0 0.0
      %607 = vmatpush1.msra.mxu0 0.0
      %608 = vmatprep.subr.mxu0 0.0
      %609 = vmatpush1.msra.mxu0 0.0
      %610 = vmatprep.subr.mxu0 0.0
      %611 = vmatpush1.msra.mxu0 0.0
      %612 = vmatprep.subr.mxu0 0.0
      %613 = vmatpush1.msra.mxu0 0.0
      %614 = vmatprep.subr.mxu0 0.0
      %615 = vmatpush1.msra.mxu0 0.0
      %616 = vmatprep.subr.mxu0 0.0
      %617 = vmatpush1.msra.mxu0 0.0
      %618 = vmatprep.subr.mxu0 0.0
      %619 = vmatpush1.msra.mxu0 0.0
      %620 = vmatprep.subr.mxu0 0.0
      %621 = vmatpush1.msra.mxu0 0.0
      %622 = vmatprep.subr.mxu0 0.0
      %623 = vmatpush1.msra.mxu0 0.0
      %624 = vmatprep.subr.mxu0 0.0
      %625 = vmatpush1.msra.mxu0 0.0
      %626 = vmatprep.subr.mxu0 0.0
      %627 = vmatpush1.msra.mxu0 0.0
      %628 = vmatprep.subr.mxu0 0.0
      %629 = vmatpush1.msra.mxu0 0.0
      %630 = vmatprep.subr.mxu0 0.0
      %631 = vmatpush1.msra.mxu0 0.0
      %632 = vmatprep.subr.mxu0 0.0
      %633 = vmatpush1.msra.mxu0 0.0
      %634 = vmatprep.subr.mxu0 0.0
      %635 = vmatpush1.msra.mxu0 0.0
      %636 = vmatprep.subr.mxu0 0.0
      %637 = vmatpush1.msra.mxu0 0.0
      %638 = vmatprep.subr.mxu0 0.0
      %639 = vmatpush1.msra.mxu0 0.0
      %640 = vmatprep.subr.mxu0 0.0
      %641 = vmatpush1.msra.mxu0 0.0
      %642 = vmatprep.subr.mxu0 0.0
      %643 = vmatpush1.msra.mxu0 0.0
      %644 = vmatprep.subr.mxu0 0.0
      %645 = vmatpush1.msra.mxu0 0.0
      %646 = vmatprep.subr.mxu0 0.0
      %647 = vmatpush1.msra.mxu0 0.0
      %648 = vmatprep.mubr.f32.mxu0 0.0
      %649 = vmatmul.mubr.f32.gmra.mrb[0].mxu0 %v579
      %v650 = vpop.f32.mrb[0].mxu0
      %v651 = vadd.f32 0.0, %v650
      %v652 = vpop.f32.mrb[0].mxu0
      %653 = vmatprep.mubr.f32.mxu0 0.0
      %654 = vmatmul.mubr.f32.gmra.mrb[0].mxu0 %v582
      %v655 = vpop.f32.mrb[0].mxu0
      %v656 = vadd.f32 0.0, %v655
      %v657 = vpop.f32.mrb[0].mxu0
      %658 = vdwg.mxu0
      %s659 = scalar_lea.vmem %s170, 32
      %660 = vst.msk [vmem:[%s659] sm:$0xff] %vm341, %v651
      %661 = vst.msk [vmem:[%s659 + $0x8] sm:$0xff] %vm341, %v656
      %662 = vmatprep.subr.mxu0 0.0
      %663 = vmatpush1.msra.mxu0 %v177
      %664 = vmatprep.subr.mxu0 0.0
      %665 = vmatpush1.msra.mxu0 0.0
      %666 = vmatprep.subr.mxu0 0.0
      %667 = vmatpush1.msra.mxu0 0.0
      %668 = vmatprep.subr.mxu0 0.0
      %669 = vmatpush1.msra.mxu0 0.0
      %670 = vmatprep.subr.mxu0 0.0
      %671 = vmatpush1.msra.mxu0 0.0
      %672 = vmatprep.subr.mxu0 0.0
      %673 = vmatpush1.msra.mxu0 0.0
      %674 = vmatprep.subr.mxu0 0.0
      %675 = vmatpush1.msra.mxu0 0.0
      %676 = vmatprep.subr.mxu0 0.0
      %677 = vmatpush1.msra.mxu0 0.0
      %678 = vmatprep.subr.mxu0 0.0
      %679 = vmatpush1.msra.mxu0 0.0
      %680 = vmatprep.subr.mxu0 0.0
      %681 = vmatpush1.msra.mxu0 0.0
      %682 = vmatprep.subr.mxu0 0.0
      %683 = vmatpush1.msra.mxu0 0.0
      %684 = vmatprep.subr.mxu0 0.0
      %685 = vmatpush1.msra.mxu0 0.0
      %686 = vmatprep.subr.mxu0 0.0
      %687 = vmatpush1.msra.mxu0 0.0
      %688 = vmatprep.subr.mxu0 0.0
      %689 = vmatpush1.msra.mxu0 0.0
      %690 = vmatprep.subr.mxu0 0.0
      %691 = vmatpush1.msra.mxu0 0.0
      %692 = vmatprep.subr.mxu0 0.0
      %693 = vmatpush1.msra.mxu0 0.0
      %694 = vmatprep.subr.mxu0 0.0
      %695 = vmatpush1.msra.mxu0 0.0
      %696 = vmatprep.subr.mxu0 0.0
      %697 = vmatpush1.msra.mxu0 0.0
      %698 = vmatprep.subr.mxu0 0.0
      %699 = vmatpush1.msra.mxu0 0.0
      %700 = vmatprep.subr.mxu0 0.0
      %701 = vmatpush1.msra.mxu0 0.0
      %702 = vmatprep.subr.mxu0 0.0
      %703 = vmatpush1.msra.mxu0 0.0
      %704 = vmatprep.subr.mxu0 0.0
      %705 = vmatpush1.msra.mxu0 0.0
      %706 = vmatprep.subr.mxu0 0.0
      %707 = vmatpush1.msra.mxu0 0.0
      %708 = vmatprep.subr.mxu0 0.0
      %709 = vmatpush1.msra.mxu0 0.0
      %710 = vmatprep.subr.mxu0 0.0
      %711 = vmatpush1.msra.mxu0 0.0
      %712 = vmatprep.subr.mxu0 0.0
      %713 = vmatpush1.msra.mxu0 0.0
      %714 = vmatprep.subr.mxu0 0.0
      %715 = vmatpush1.msra.mxu0 0.0
      %716 = vmatprep.subr.mxu0 0.0
      %717 = vmatpush1.msra.mxu0 0.0
      %718 = vmatprep.subr.mxu0 0.0
      %719 = vmatpush1.msra.mxu0 0.0
      %720 = vmatprep.subr.mxu0 0.0
      %721 = vmatpush1.msra.mxu0 0.0
      %722 = vmatprep.subr.mxu0 0.0
      %723 = vmatpush1.msra.mxu0 0.0
      %724 = vmatprep.subr.mxu0 0.0
      %725 = vmatpush1.msra.mxu0 0.0
      %726 = vmatprep.mubr.f32.mxu0 0.0
      %727 = vmatmul.mubr.f32.gmra.mrb[0].mxu0 %v180
      %v728 = vpop.f32.mrb[0].mxu0
      %v729 = vadd.f32 0.0, %v728
      %v730 = vpop.f32.mrb[0].mxu0
      %731 = vmatprep.mubr.f32.mxu0 0.0
      %732 = vmatmul.mubr.f32.gmra.mrb[0].mxu0 %v183
      %v733 = vpop.f32.mrb[0].mxu0
      %v734 = vadd.f32 0.0, %v733
      %v735 = vpop.f32.mrb[0].mxu0
      %736 = vdwg.mxu0
      %v738 = vsel %vm178, %v729, 0
      %v741 = vsel %vm178, %v734, 0
      %743 = vmatprep.subr.mxu0 0.0
      %744 = vmatpush1.msra.mxu0 %v173
      %745 = vmatprep.subr.mxu0 0.0
      %746 = vmatpush1.msra.mxu0 0.0
      %747 = vmatprep.subr.mxu0 0.0
      %748 = vmatpush1.msra.mxu0 0.0
      %749 = vmatprep.subr.mxu0 0.0
      %750 = vmatpush1.msra.mxu0 0.0
      %751 = vmatprep.subr.mxu0 0.0
      %752 = vmatpush1.msra.mxu0 0.0
      %753 = vmatprep.subr.mxu0 0.0
      %754 = vmatpush1.msra.mxu0 0.0
      %755 = vmatprep.subr.mxu0 0.0
      %756 = vmatpush1.msra.mxu0 0.0
      %757 = vmatprep.subr.mxu0 0.0
      %758 = vmatpush1.msra.mxu0 0.0
      %759 = vmatprep.subr.mxu0 0.0
      %760 = vmatpush1.msra.mxu0 0.0
      %761 = vmatprep.subr.mxu0 0.0
      %762 = vmatpush1.msra.mxu0 0.0
      %763 = vmatprep.subr.mxu0 0.0
      %764 = vmatpush1.msra.mxu0 0.0
      %765 = vmatprep.subr.mxu0 0.0
      %766 = vmatpush1.msra.mxu0 0.0
      %767 = vmatprep.subr.mxu0 0.0
      %768 = vmatpush1.msra.mxu0 0.0
      %769 = vmatprep.subr.mxu0 0.0
      %770 = vmatpush1.msra.mxu0 0.0
      %771 = vmatprep.subr.mxu0 0.0
      %772 = vmatpush1.msra.mxu0 0.0
      %773 = vmatprep.subr.mxu0 0.0
      %774 = vmatpush1.msra.mxu0 0.0
      %775 = vmatprep.subr.mxu0 0.0
      %776 = vmatpush1.msra.mxu0 0.0
      %777 = vmatprep.subr.mxu0 0.0
      %778 = vmatpush1.msra.mxu0 0.0
      %779 = vmatprep.subr.mxu0 0.0
      %780 = vmatpush1.msra.mxu0 0.0
      %781 = vmatprep.subr.mxu0 0.0
      %782 = vmatpush1.msra.mxu0 0.0
      %783 = vmatprep.subr.mxu0 0.0
      %784 = vmatpush1.msra.mxu0 0.0
      %785 = vmatprep.subr.mxu0 0.0
      %786 = vmatpush1.msra.mxu0 0.0
      %787 = vmatprep.subr.mxu0 0.0
      %788 = vmatpush1.msra.mxu0 0.0
      %789 = vmatprep.subr.mxu0 0.0
      %790 = vmatpush1.msra.mxu0 0.0
      %791 = vmatprep.subr.mxu0 0.0
      %792 = vmatpush1.msra.mxu0 0.0
      %793 = vmatprep.subr.mxu0 0.0
      %794 = vmatpush1.msra.mxu0 0.0
      %795 = vmatprep.subr.mxu0 0.0
      %796 = vmatpush1.msra.mxu0 0.0
      %797 = vmatprep.subr.mxu0 0.0
      %798 = vmatpush1.msra.mxu0 0.0
      %799 = vmatprep.subr.mxu0 0.0
      %800 = vmatpush1.msra.mxu0 0.0
      %801 = vmatprep.subr.mxu0 0.0
      %802 = vmatpush1.msra.mxu0 0.0
      %803 = vmatprep.subr.mxu0 0.0
      %804 = vmatpush1.msra.mxu0 0.0
      %805 = vmatprep.subr.mxu0 0.0
      %806 = vmatpush1.msra.mxu0 0.0
      %807 = vmatprep.mubr.f32.mxu0 0.0
      %808 = vmatmul.mubr.f32.gmra.mrb[0].mxu0 %v738
      %v809 = vpop.f32.mrb[0].mxu0
      %v810 = vadd.f32 0.0, %v809
      %v811 = vpop.f32.mrb[0].mxu0
      %812 = vmatprep.mubr.f32.mxu0 0.0
      %813 = vmatmul.mubr.f32.gmra.mrb[0].mxu0 %v741
      %v814 = vpop.f32.mrb[0].mxu0
      %v815 = vadd.f32 0.0, %v814
      %v816 = vpop.f32.mrb[0].mxu0
      %817 = vdwg.mxu0
      %s818 = scalar_lea.vmem %s170, 48
      %819 = vst.msk [vmem:[%s818] sm:$0xff] %vm341, %v810
      %820 = vst.msk [vmem:[%s818 + $0x8] sm:$0xff] %vm341, %v815
      %p821 = scmp.lt.s32.totalorder %s14, 1
      %s822 = scalar_select %p821, %s14, 1
      %s823 = smul.addr %s822, 8
      %s824 = smul.addr %s823, 8
      %s825 = scalar_lea.vmem %s3, %s824
      // Predicated region
      $region33: #{up_forward.4} parent=31 // pred_check
        %p826 = pneg %p100
      $region34: #{up_forward.4} parent=31 // pred_check_branch
        %828 = sbr.rel (%p826) target = $region36
      $region35: #{up_forward.4} parent=31 // pred_region
        _
      $region36: #{up_forward.4} parent=31 // pred_fallthru
        _
    $region32: #{up_forward.4} parent=5 // pred_fallthru
      _
    %p829 = scmp.le.s32.totalorder 2, %s9
    // Predicated region
    $region37: #{up_forward.4} parent=5 // pred_check
      %p830 = pneg %p829
    $region38: #{up_forward.4} parent=5 // pred_check_branch
      %832 = sbr.rel (%p830) target = $region40
    $region39: #{up_forward.4} parent=5 // pred_region
      %s833 = ssub.s32 %s9, 2
      // Predicated region
      $region41: #{up_forward.4} parent=39 // pred_check
        %p834 = pneg %p106
      $region42: #{up_forward.4} parent=39 // pred_check_branch
        %836 = sbr.rel (%p834) target = $region44
      $region43: #{up_forward.4} parent=39 // pred_region
        %p837 = scmp.lt.s32.totalorder %s15, 1
        %s838 = scalar_select %p837, %s15, 1
        %s839 = smul.addr %s838, 8
        %s840 = smul.addr %s839, 8
        %s841 = scalar_lea.vmem %s3, %s840
      $region44: #{up_forward.4} parent=39 // pred_fallthru
        _
    $region40: #{up_forward.4} parent=5 // pred_fallthru
      _
  $region6: #{up_forward.4} parent=0 // loop_footer
    %s13 = sadd.s32 1, %s9
  $region7: #{up_forward.4} parent=0 // loop_footer_branch
    %8 = sbr.rel target = $region3
  $region8: #{up_forward.4} parent=0 // loop_exit
    _

</llo_original>
